<compile_context>
chip_gen: v7x
topology: tpu7x:2x2x1
jax: 0.10.0
libtpu: 0.0.40
codegen_flags: <defaults>
</compile_context>

<pallas_src>
import math
import functools
import numpy as np
import jax
import jax.numpy as jnp
from jax.experimental import pallas as pl
from jax.experimental.pallas import tpu as pltpu

# ----------------------------- static shape config ----------------------------- #
C_IN = 4               # in_chan
H = W = 16             # input spatial size
C = 16                 # out_chan
KH = KW = 3            # conv kernel size

H1, W1 = H - 2, W - 2                    # conv1 (VALID) output: 14 x 14
HO = (H1 - 3) // 2 + 1                   # maxpool output: 6
WO = (W1 - 3) // 2 + 1                   # maxpool output: 6
HP, WP = HO + 2, WO + 2                  # zero-padded res-block activation: 8 x 8

K1 = KH * W * C_IN                       # fused-tap conv1 contraction depth: 192
N1 = 2 * 128                             # conv1 output columns ([even x | odd x], each 128-padded)
KR = KH * WP * C                         # fused-tap res-conv contraction depth: 384
NR = WP * C                              # lane-dense res activation row width: 128

# Even H rows first, then odd H rows (folds the pool's row decimation into conv1's row order).
ROW_PERM = np.concatenate([np.arange(0, H, 2), np.arange(1, H, 2)])


# ------------------------------- fused Pallas kernel ------------------------------- #
def impala_block_kernel(x_ref, w1_ref, b1_ref, wr_ref, br_ref, o_ref):
    f32 = jnp.float32
    x = x_ref[...]                                           # (B, 16, 64); rows = [H even | H odd]
    b = x.shape[0]

    # ---- Conv2d(C_IN -> C, 3x3, VALID): ONE MXU matmul (taps fused into K, batch folded into M)
    #   slab rows 0..6  -> conv output rows 0,2,...,12 (even)
    #   slab rows 7..12 -> conv output rows 1,3,...,11 (odd); rows 13..15 are padding.
    even = jnp.concatenate([x[:, 0:7, :], x[:, 8:15, :], x[:, 1:8, :]], axis=-1)     # (B,7,192)
    odd = jnp.concatenate([x[:, 8:14, :], x[:, 1:7, :], x[:, 9:15, :]], axis=-1)     # (B,6,192)
    slab = jnp.concatenate([even, odd, jnp.zeros((b, 3, K1), f32)], axis=1)          # (B,16,192)
    c = jnp.dot(slab.reshape(b * 16, K1), w1_ref[...],
                preferred_element_type=f32) + b1_ref[...]                             # (B*16, 256)
    c = c.reshape(b, 16, N1)

    # ---- MaxPool2d(3, stride 2): decimation is already folded into the even/odd layouts ----
    rp = jnp.maximum(jnp.maximum(c[:, 0:HO, :], c[:, 7:7 + HO, :]), c[:, 1:1 + HO, :])   # (B,6,256)
    pooled = jnp.maximum(jnp.maximum(rp[:, :, 0:WO * C], rp[:, :, 128:128 + WO * C]),
                         rp[:, :, C:C + WO * C])                                         # (B,6,96)

    # Zero-padded activation layout (B, 8, 128): rows 0/7 and lanes 96..127 stay 0 (SAME padding).
    zrow = jnp.zeros((b, 1, NR), f32)
    act = jnp.concatenate(
        [zrow, jnp.concatenate([pooled, jnp.zeros((b, HO, 2 * C), f32)], axis=-1), zrow],
        axis=1)                                                                           # (B,8,128)

    ri = jax.lax.broadcasted_iota(jnp.int32, (HP, 1), 0)
    row_mask = ((ri >= 1) & (ri <= HO)).astype(f32)          # keeps the pad rows exactly zero

    def conv3x3_same(a, idx):
        # a: (B,8,128) relu'd zero-padded activation; returns the zero-padded conv output.
        z = jnp.zeros((b, 1, NR), f32)
        seg0 = jnp.concatenate([z, a[:, 0:HP - 1, :]], axis=1)        # tap ky=0 rows
        seg2 = jnp.concatenate([a[:, 1:HP, :], z], axis=1)            # tap ky=2 rows
        sl = jnp.concatenate([seg0, a, seg2], axis=-1)                # (B,8,384)
        h = jnp.dot(sl.reshape(b * HP, KR), wr_ref[idx], preferred_element_type=f32)
        return h.reshape(b, HP, NR) * row_mask + br_ref[idx]          # (B,8,128)

    # Two ResBlocks: act <- act + conv(relu(conv(relu(act))))
    for blk in range(2):
        h = conv3x3_same(jnp.maximum(act, 0.0), 2 * blk)
        h = conv3x3_same(jnp.maximum(h, 0.0), 2 * blk + 1)
        act = act + h

    o_ref[...] = act                                                   # lane-dense (B,8,128) store


def _impala_block_pallas(x_rows, w1, b1, wr, br, b_tile):
    n = x_rows.shape[0]
    return pl.pallas_call(
        impala_block_kernel,
        out_shape=jax.ShapeDtypeStruct((n, HP, NR), jnp.float32),
        grid=(n // b_tile,),
        in_specs=[
            pl.BlockSpec((b_tile, H, W * C_IN), lambda i: (i, 0, 0)),   # batch tile of inputs
            pl.BlockSpec((K1, N1), lambda i: (0, 0)),                   # folded conv1 weights
            pl.BlockSpec((1, N1), lambda i: (0, 0)),                    # conv1 bias row
            pl.BlockSpec((4, KR, NR), lambda i: (0, 0, 0)),             # folded res-conv weights
            pl.BlockSpec((4, HP, NR), lambda i: (0, 0, 0)),             # res-conv bias planes
        ],
        out_specs=pl.BlockSpec((b_tile, HP, NR), lambda i: (i, 0, 0)),
        compiler_params=pltpu.CompilerParams(dimension_semantics=("parallel",)),
    )(x_rows, w1, b1, wr, br)


# ------------------------------ host-side weight folding (one-time) ------------------------------ #
def fold_impala_params(params):
    """Fold PyTorch-layout weights into the kernel's banded / lane-dense layouts (numpy, one-time)."""
    w0 = np.asarray(params["w0"], np.float32)                 # (C, C_IN, 3, 3)
    b0 = np.asarray(params["b0"], np.float32)                 # (C,)

    # Conv1: fused-tap banded matrix; output columns grouped [even x | odd x], each group 128-padded.
    w1 = np.zeros((K1, N1), np.float32)
    b1 = np.zeros((1, N1), np.float32)
    for xo in range(W1):
        col0 = (xo // 2) * C if xo % 2 == 0 else 128 + (xo // 2) * C
        b1[0, col0:col0 + C] = b0
        for ky in range(KH):
            for kx in range(KW):
                xi = xo + kx
                for ci in range(C_IN):
                    w1[ky * W * C_IN + xi * C_IN + ci, col0:col0 + C] = w0[:, ci, ky, kx]

    # Res convs: fused-tap banded matrices operating on the zero-padded (8, 128) activation layout.
    wr = np.zeros((4, KR, NR), np.float32)
    br = np.zeros((4, HP, NR), np.float32)
    for idx in range(4):
        wk = np.asarray(params[f"wr{idx}"], np.float32)       # (C, C, 3, 3)
        bk = np.asarray(params[f"br{idx}"], np.float32)       # (C,)
        for xo in range(WO):
            br[idx, 1:1 + HO, xo * C:(xo + 1) * C] = bk[None, :]
            for ky in range(KH):
                for kx in range(KW):
                    j = xo + kx - 1                            # input data column; pads contribute 0
                    if 0 <= j < WO:
                        for ci in range(C):
                            wr[idx, ky * NR + j * C + ci, xo * C:(xo + 1) * C] = wk[:, ci, ky, kx]

    return {"w1": jnp.asarray(w1), "b1": jnp.asarray(b1),
            "wr": jnp.asarray(wr), "br": jnp.asarray(br)}


@functools.partial(jax.jit, static_argnames=("b_tile",))
def impala_block_forward(x_nchw, folded, b_tile):
    n = x_nchw.shape[0]
    # NCHW -> (N, H, W*C_IN) row layout with H rows pre-sorted even/odd.
    # TODO(synk): the NCHW<->rows conversion stays in the XLA wrapper (tiny); it is not fused in-kernel.
    x_rows = jnp.transpose(x_nchw, (0, 2, 3, 1))[:, ROW_PERM, :, :].reshape(n, H, W * C_IN)
    out = _impala_block_pallas(x_rows, folded["w1"], folded["b1"],
                               folded["wr"], folded["br"], b_tile)            # (N, 8, 128)
    y = out[:, 1:1 + HO, :WO * C].reshape(n, HO, WO, C)
    return jnp.transpose(y, (0, 3, 1, 2))                                     # NCHW (N, C, 6, 6)


# ---------------------------- params & pure-JAX reference ---------------------------- #
def orthogonal(key, shape, gain):
    rows = shape[0]
    cols = int(np.prod(shape[1:]))
    a = jax.random.normal(key, (max(rows, cols), min(rows, cols)), jnp.float32)
    q, r = jnp.linalg.qr(a)
    q = q * jnp.sign(jnp.diagonal(r))
    if rows < cols:
        q = q.T
    return (gain * q[:rows, :cols]).reshape(shape).astype(jnp.float32)


def reference_forward(x, params):
    """Pure-JAX reference of ImpalaBlock.forward (NCHW)."""
    def conv(h, w, bias, padding):
        y = jax.lax.conv_general_dilated(
            h, w, window_strides=(1, 1), padding=padding,
            dimension_numbers=("NCHW", "OIHW", "NCHW"),
            precision=jax.lax.Precision.HIGHEST)
        return y + bias[None, :, None, None]

    y = conv(x, params["w0"], params["b0"], "VALID")
    y = jax.lax.reduce_window(y, -jnp.inf, jax.lax.max, (1, 1, 3, 3), (1, 1, 2, 2), "VALID")
    for blk in range(2):
        h = conv(jnp.maximum(y, 0.0), params[f"wr{2 * blk}"], params[f"br{2 * blk}"],
                 [(1, 1), (1, 1)])
        h = conv(jnp.maximum(h, 0.0), params[f"wr{2 * blk + 1}"], params[f"br{2 * blk + 1}"],
                 [(1, 1), (1, 1)])
        y = y + h
    return y


if __name__ == "__main__":
    key = jax.random.PRNGKey(0)
    keys = jax.random.split(key, 12)
    # Module init uses orthogonal(sqrt(2)) weights and zero biases; small non-zero biases are used
    # here so the bias-add path is exercised by the numerical check.
    params = {
        "w0": orthogonal(keys[0], (C, C_IN, KH, KW), math.sqrt(2)),
        "b0": 0.05 * jax.random.normal(keys[1], (C,), jnp.float32),
    }
    for i in range(4):
        params[f"wr{i}"] = orthogonal(keys[2 + 2 * i], (C, C, KH, KW), math.sqrt(2))
        params[f"br{i}"] = 0.05 * jax.random.normal(keys[3 + 2 * i], (C,), jnp.float32)

    x = jax.random.normal(keys[10], (2, C_IN, H, W), jnp.float32)
    n = x.shape[0]
    # Largest batch tile <= 16 that divides N (for large N this also keeps >=2 grid steps so both
    # v7x TensorCores get work; for the single-TC v5e/v6e fewer, bigger steps are preferred).
    b_tile = max(d for d in range(1, min(n, 16) + 1) if n % d == 0)

    folded = fold_impala_params(params)                 # one-time host-side folding (off hot path)
    out = jax.block_until_ready(impala_block_forward(x, folded, b_tile))
    assert out.shape == (n, C, HO, WO)

    ref = reference_forward(x, params)
    np.testing.assert_allclose(np.asarray(out), np.asarray(ref), rtol=1e-4, atol=1e-3)
    print("KERNEL_OK")
</pallas_src>

<mosaic_0001>
module attributes {stable_mosaic.version = 11 : i64} {
  func.func @impala_block_kernel(%arg0: i32, %arg1: memref<2x16x64xf32, #tpu.memory_space<vmem>>, %arg2: memref<192x256xf32, #tpu.memory_space<vmem>>, %arg3: memref<1x256xf32, #tpu.memory_space<vmem>>, %arg4: memref<4x384x128xf32, #tpu.memory_space<vmem>>, %arg5: memref<4x8x128xf32, #tpu.memory_space<vmem>>, %arg6: memref<2x8x128xf32, #tpu.memory_space<vmem>>) attributes {dimension_semantics = [#tpu.dimension_semantics<parallel>], iteration_bounds = array<i64: 1>, scalar_prefetch = 0 : i64, scratch_operands = 0 : i64, tpu.core_type = #tpu.core_type<tc>, window_params = [{transform_indices = @transform_0, window_bounds = array<i64: 2, 16, 64>}, {pipeline_mode = #tpu.pipeline_mode<synchronous>, transform_indices = @transform_1, window_bounds = array<i64: 192, 256>}, {pipeline_mode = #tpu.pipeline_mode<synchronous>, transform_indices = @transform_2, window_bounds = array<i64: 1, 256>}, {pipeline_mode = #tpu.pipeline_mode<synchronous>, transform_indices = @transform_3, window_bounds = array<i64: 4, 384, 128>}, {pipeline_mode = #tpu.pipeline_mode<synchronous>, transform_indices = @transform_4, window_bounds = array<i64: 4, 8, 128>}, {transform_indices = @transform_5, window_bounds = array<i64: 2, 8, 128>}]} {
    %c0 = arith.constant 0 : index
    %c0_0 = arith.constant 0 : index
    %c0_1 = arith.constant 0 : index
    %0 = vector.load %arg1[%c0, %c0_0, %c0_1] : memref<2x16x64xf32, #tpu.memory_space<vmem>>, vector<2x16x64xf32>
    %1 = vector.extract_strided_slice %0 {offsets = [0, 0, 0], sizes = [2, 7, 64], strides = [1, 1, 1]} : vector<2x16x64xf32> to vector<2x7x64xf32>
    %2 = vector.extract_strided_slice %0 {offsets = [0, 8, 0], sizes = [2, 7, 64], strides = [1, 1, 1]} : vector<2x16x64xf32> to vector<2x7x64xf32>
    %3 = vector.extract_strided_slice %0 {offsets = [0, 1, 0], sizes = [2, 7, 64], strides = [1, 1, 1]} : vector<2x16x64xf32> to vector<2x7x64xf32>
    %4 = tpu.concatenate %1, %2, %3 in 2 : vector<2x7x64xf32>, vector<2x7x64xf32>, vector<2x7x64xf32> -> vector<2x7x192xf32>
    %5 = vector.extract_strided_slice %0 {offsets = [0, 8, 0], sizes = [2, 6, 64], strides = [1, 1, 1]} : vector<2x16x64xf32> to vector<2x6x64xf32>
    %6 = vector.extract_strided_slice %0 {offsets = [0, 1, 0], sizes = [2, 6, 64], strides = [1, 1, 1]} : vector<2x16x64xf32> to vector<2x6x64xf32>
    %7 = vector.extract_strided_slice %0 {offsets = [0, 9, 0], sizes = [2, 6, 64], strides = [1, 1, 1]} : vector<2x16x64xf32> to vector<2x6x64xf32>
    %8 = tpu.concatenate %5, %6, %7 in 2 : vector<2x6x64xf32>, vector<2x6x64xf32>, vector<2x6x64xf32> -> vector<2x6x192xf32>
    %cst = arith.constant 0.000000e+00 : f32
    %9 = vector.broadcast %cst : f32 to vector<2x3x192xf32>
    %10 = tpu.concatenate %4, %8, %9 in 1 : vector<2x7x192xf32>, vector<2x6x192xf32>, vector<2x3x192xf32> -> vector<2x16x192xf32>
    %11 = vector.shape_cast %10 : vector<2x16x192xf32> to vector<32x192xf32>
    %c0_2 = arith.constant 0 : index
    %c0_3 = arith.constant 0 : index
    %12 = vector.load %arg2[%c0_2, %c0_3] : memref<192x256xf32, #tpu.memory_space<vmem>>, vector<192x256xf32>
    %cst_4 = arith.constant dense<0.000000e+00> : vector<32x256xf32>
    %13 = tpu.matmul %11, %12, %cst_4 {dimension_numbers = #tpu.dot_dimension_numbers<[1], [0], [0], [1], [0, 0, 1, 1], [], []>} : vector<32x192xf32>, vector<192x256xf32>, vector<32x256xf32> -> vector<32x256xf32>
    %c0_5 = arith.constant 0 : index
    %c0_6 = arith.constant 0 : index
    %14 = vector.load %arg3[%c0_5, %c0_6] : memref<1x256xf32, #tpu.memory_space<vmem>>, vector<1x256xf32>
    %15 = vector.broadcast %14 : vector<1x256xf32> to vector<32x256xf32>
    %16 = arith.addf %13, %15 : vector<32x256xf32>
    %17 = vector.shape_cast %16 : vector<32x256xf32> to vector<2x16x256xf32>
    %18 = vector.extract_strided_slice %17 {offsets = [0, 0, 0], sizes = [2, 6, 256], strides = [1, 1, 1]} : vector<2x16x256xf32> to vector<2x6x256xf32>
    %19 = vector.extract_strided_slice %17 {offsets = [0, 7, 0], sizes = [2, 6, 256], strides = [1, 1, 1]} : vector<2x16x256xf32> to vector<2x6x256xf32>
    %20 = arith.maximumf %18, %19 : vector<2x6x256xf32>
    %21 = vector.extract_strided_slice %17 {offsets = [0, 1, 0], sizes = [2, 6, 256], strides = [1, 1, 1]} : vector<2x16x256xf32> to vector<2x6x256xf32>
    %22 = arith.maximumf %20, %21 : vector<2x6x256xf32>
    %23 = vector.extract_strided_slice %22 {offsets = [0, 0, 0], sizes = [2, 6, 96], strides = [1, 1, 1]} : vector<2x6x256xf32> to vector<2x6x96xf32>
    %24 = vector.extract_strided_slice %22 {offsets = [0, 0, 128], sizes = [2, 6, 96], strides = [1, 1, 1]} : vector<2x6x256xf32> to vector<2x6x96xf32>
    %25 = arith.maximumf %23, %24 : vector<2x6x96xf32>
    %26 = vector.extract_strided_slice %22 {offsets = [0, 0, 16], sizes = [2, 6, 96], strides = [1, 1, 1]} : vector<2x6x256xf32> to vector<2x6x96xf32>
    %27 = arith.maximumf %25, %26 : vector<2x6x96xf32>
    %cst_7 = arith.constant 0.000000e+00 : f32
    %28 = vector.broadcast %cst_7 : f32 to vector<2x1x128xf32>
    %cst_8 = arith.constant 0.000000e+00 : f32
    %29 = vector.broadcast %cst_8 : f32 to vector<2x6x32xf32>
    %30 = tpu.concatenate %27, %29 in 2 : vector<2x6x96xf32>, vector<2x6x32xf32> -> vector<2x6x128xf32>
    %31 = tpu.concatenate %28, %30, %28 in 1 : vector<2x1x128xf32>, vector<2x6x128xf32>, vector<2x1x128xf32> -> vector<2x8x128xf32>
    %32 = tpu.iota {dimensions = array<i32: 0>} : vector<8x1xi32>
    %c1_i32 = arith.constant 1 : i32
    %33 = vector.broadcast %c1_i32 : i32 to vector<8x1xi32>
    %34 = arith.cmpi sge, %32, %33 : vector<8x1xi32>
    %c6_i32 = arith.constant 6 : i32
    %35 = vector.broadcast %c6_i32 : i32 to vector<8x1xi32>
    %36 = arith.cmpi sle, %32, %35 : vector<8x1xi32>
    %37 = arith.andi %34, %36 : vector<8x1xi1>
    %38 = arith.extui %37 : vector<8x1xi1> to vector<8x1xi32>
    %39 = arith.sitofp %38 : vector<8x1xi32> to vector<8x1xf32>
    %cst_9 = arith.constant 0.000000e+00 : f32
    %40 = vector.broadcast %cst_9 : f32 to vector<2x8x128xf32>
    %41 = arith.maximumf %31, %40 : vector<2x8x128xf32>
    %cst_10 = arith.constant 0.000000e+00 : f32
    %42 = vector.broadcast %cst_10 : f32 to vector<2x1x128xf32>
    %43 = vector.extract_strided_slice %41 {offsets = [0, 0, 0], sizes = [2, 7, 128], strides = [1, 1, 1]} : vector<2x8x128xf32> to vector<2x7x128xf32>
    %44 = tpu.concatenate %42, %43 in 1 : vector<2x1x128xf32>, vector<2x7x128xf32> -> vector<2x8x128xf32>
    %45 = vector.extract_strided_slice %41 {offsets = [0, 1, 0], sizes = [2, 7, 128], strides = [1, 1, 1]} : vector<2x8x128xf32> to vector<2x7x128xf32>
    %46 = tpu.concatenate %45, %42 in 1 : vector<2x7x128xf32>, vector<2x1x128xf32> -> vector<2x8x128xf32>
    %47 = tpu.concatenate %44, %41, %46 in 2 : vector<2x8x128xf32>, vector<2x8x128xf32>, vector<2x8x128xf32> -> vector<2x8x384xf32>
    %48 = vector.shape_cast %47 : vector<2x8x384xf32> to vector<16x384xf32>
    %c0_11 = arith.constant 0 : index
    %c0_12 = arith.constant 0 : index
    %c0_13 = arith.constant 0 : index
    %49 = vector.load %arg4[%c0_11, %c0_12, %c0_13] : memref<4x384x128xf32, #tpu.memory_space<vmem>>, vector<1x384x128xf32>
    %50 = vector.shape_cast %49 : vector<1x384x128xf32> to vector<384x128xf32>
    %cst_14 = arith.constant dense<0.000000e+00> : vector<16x128xf32>
    %51 = tpu.matmul %48, %50, %cst_14 {dimension_numbers = #tpu.dot_dimension_numbers<[1], [0], [0], [1], [0, 0, 1, 1], [], []>} : vector<16x384xf32>, vector<384x128xf32>, vector<16x128xf32> -> vector<16x128xf32>
    %52 = vector.shape_cast %51 : vector<16x128xf32> to vector<2x8x128xf32>
    %53 = vector.shape_cast %39 : vector<8x1xf32> to vector<1x8x1xf32>
    %54 = vector.broadcast %53 : vector<1x8x1xf32> to vector<2x8x128xf32>
    %55 = arith.mulf %52, %54 : vector<2x8x128xf32>
    %c0_15 = arith.constant 0 : index
    %c0_16 = arith.constant 0 : index
    %c0_17 = arith.constant 0 : index
    %56 = vector.load %arg5[%c0_15, %c0_16, %c0_17] : memref<4x8x128xf32, #tpu.memory_space<vmem>>, vector<1x8x128xf32>
    %57 = vector.shape_cast %56 : vector<1x8x128xf32> to vector<8x128xf32>
    %58 = vector.shape_cast %57 : vector<8x128xf32> to vector<1x8x128xf32>
    %59 = vector.broadcast %58 : vector<1x8x128xf32> to vector<2x8x128xf32>
    %60 = arith.addf %55, %59 : vector<2x8x128xf32>
    %cst_18 = arith.constant 0.000000e+00 : f32
    %61 = vector.broadcast %cst_18 : f32 to vector<2x8x128xf32>
    %62 = arith.maximumf %60, %61 : vector<2x8x128xf32>
    %cst_19 = arith.constant 0.000000e+00 : f32
    %63 = vector.broadcast %cst_19 : f32 to vector<2x1x128xf32>
    %64 = vector.extract_strided_slice %62 {offsets = [0, 0, 0], sizes = [2, 7, 128], strides = [1, 1, 1]} : vector<2x8x128xf32> to vector<2x7x128xf32>
    %65 = tpu.concatenate %63, %64 in 1 : vector<2x1x128xf32>, vector<2x7x128xf32> -> vector<2x8x128xf32>
    %66 = vector.extract_strided_slice %62 {offsets = [0, 1, 0], sizes = [2, 7, 128], strides = [1, 1, 1]} : vector<2x8x128xf32> to vector<2x7x128xf32>
    %67 = tpu.concatenate %66, %63 in 1 : vector<2x7x128xf32>, vector<2x1x128xf32> -> vector<2x8x128xf32>
    %68 = tpu.concatenate %65, %62, %67 in 2 : vector<2x8x128xf32>, vector<2x8x128xf32>, vector<2x8x128xf32> -> vector<2x8x384xf32>
    %69 = vector.shape_cast %68 : vector<2x8x384xf32> to vector<16x384xf32>
    %c1 = arith.constant 1 : index
    %c0_20 = arith.constant 0 : index
    %c0_21 = arith.constant 0 : index
    %70 = vector.load %arg4[%c1, %c0_20, %c0_21] : memref<4x384x128xf32, #tpu.memory_space<vmem>>, vector<1x384x128xf32>
    %71 = vector.shape_cast %70 : vector<1x384x128xf32> to vector<384x128xf32>
    %cst_22 = arith.constant dense<0.000000e+00> : vector<16x128xf32>
    %72 = tpu.matmul %69, %71, %cst_22 {dimension_numbers = #tpu.dot_dimension_numbers<[1], [0], [0], [1], [0, 0, 1, 1], [], []>} : vector<16x384xf32>, vector<384x128xf32>, vector<16x128xf32> -> vector<16x128xf32>
    %73 = vector.shape_cast %72 : vector<16x128xf32> to vector<2x8x128xf32>
    %74 = vector.shape_cast %39 : vector<8x1xf32> to vector<1x8x1xf32>
    %75 = vector.broadcast %74 : vector<1x8x1xf32> to vector<2x8x128xf32>
    %76 = arith.mulf %73, %75 : vector<2x8x128xf32>
    %c1_23 = arith.constant 1 : index
    %c0_24 = arith.constant 0 : index
    %c0_25 = arith.constant 0 : index
    %77 = vector.load %arg5[%c1_23, %c0_24, %c0_25] : memref<4x8x128xf32, #tpu.memory_space<vmem>>, vector<1x8x128xf32>
    %78 = vector.shape_cast %77 : vector<1x8x128xf32> to vector<8x128xf32>
    %79 = vector.shape_cast %78 : vector<8x128xf32> to vector<1x8x128xf32>
    %80 = vector.broadcast %79 : vector<1x8x128xf32> to vector<2x8x128xf32>
    %81 = arith.addf %76, %80 : vector<2x8x128xf32>
    %82 = arith.addf %31, %81 : vector<2x8x128xf32>
    %cst_26 = arith.constant 0.000000e+00 : f32
    %83 = vector.broadcast %cst_26 : f32 to vector<2x8x128xf32>
    %84 = arith.maximumf %82, %83 : vector<2x8x128xf32>
    %cst_27 = arith.constant 0.000000e+00 : f32
    %85 = vector.broadcast %cst_27 : f32 to vector<2x1x128xf32>
    %86 = vector.extract_strided_slice %84 {offsets = [0, 0, 0], sizes = [2, 7, 128], strides = [1, 1, 1]} : vector<2x8x128xf32> to vector<2x7x128xf32>
    %87 = tpu.concatenate %85, %86 in 1 : vector<2x1x128xf32>, vector<2x7x128xf32> -> vector<2x8x128xf32>
    %88 = vector.extract_strided_slice %84 {offsets = [0, 1, 0], sizes = [2, 7, 128], strides = [1, 1, 1]} : vector<2x8x128xf32> to vector<2x7x128xf32>
    %89 = tpu.concatenate %88, %85 in 1 : vector<2x7x128xf32>, vector<2x1x128xf32> -> vector<2x8x128xf32>
    %90 = tpu.concatenate %87, %84, %89 in 2 : vector<2x8x128xf32>, vector<2x8x128xf32>, vector<2x8x128xf32> -> vector<2x8x384xf32>
    %91 = vector.shape_cast %90 : vector<2x8x384xf32> to vector<16x384xf32>
    %c2 = arith.constant 2 : index
    %c0_28 = arith.constant 0 : index
    %c0_29 = arith.constant 0 : index
    %92 = vector.load %arg4[%c2, %c0_28, %c0_29] : memref<4x384x128xf32, #tpu.memory_space<vmem>>, vector<1x384x128xf32>
    %93 = vector.shape_cast %92 : vector<1x384x128xf32> to vector<384x128xf32>
    %cst_30 = arith.constant dense<0.000000e+00> : vector<16x128xf32>
    %94 = tpu.matmul %91, %93, %cst_30 {dimension_numbers = #tpu.dot_dimension_numbers<[1], [0], [0], [1], [0, 0, 1, 1], [], []>} : vector<16x384xf32>, vector<384x128xf32>, vector<16x128xf32> -> vector<16x128xf32>
    %95 = vector.shape_cast %94 : vector<16x128xf32> to vector<2x8x128xf32>
    %96 = vector.shape_cast %39 : vector<8x1xf32> to vector<1x8x1xf32>
    %97 = vector.broadcast %96 : vector<1x8x1xf32> to vector<2x8x128xf32>
    %98 = arith.mulf %95, %97 : vector<2x8x128xf32>
    %c2_31 = arith.constant 2 : index
    %c0_32 = arith.constant 0 : index
    %c0_33 = arith.constant 0 : index
    %99 = vector.load %arg5[%c2_31, %c0_32, %c0_33] : memref<4x8x128xf32, #tpu.memory_space<vmem>>, vector<1x8x128xf32>
    %100 = vector.shape_cast %99 : vector<1x8x128xf32> to vector<8x128xf32>
    %101 = vector.shape_cast %100 : vector<8x128xf32> to vector<1x8x128xf32>
    %102 = vector.broadcast %101 : vector<1x8x128xf32> to vector<2x8x128xf32>
    %103 = arith.addf %98, %102 : vector<2x8x128xf32>
    %cst_34 = arith.constant 0.000000e+00 : f32
    %104 = vector.broadcast %cst_34 : f32 to vector<2x8x128xf32>
    %105 = arith.maximumf %103, %104 : vector<2x8x128xf32>
    %cst_35 = arith.constant 0.000000e+00 : f32
    %106 = vector.broadcast %cst_35 : f32 to vector<2x1x128xf32>
    %107 = vector.extract_strided_slice %105 {offsets = [0, 0, 0], sizes = [2, 7, 128], strides = [1, 1, 1]} : vector<2x8x128xf32> to vector<2x7x128xf32>
    %108 = tpu.concatenate %106, %107 in 1 : vector<2x1x128xf32>, vector<2x7x128xf32> -> vector<2x8x128xf32>
    %109 = vector.extract_strided_slice %105 {offsets = [0, 1, 0], sizes = [2, 7, 128], strides = [1, 1, 1]} : vector<2x8x128xf32> to vector<2x7x128xf32>
    %110 = tpu.concatenate %109, %106 in 1 : vector<2x7x128xf32>, vector<2x1x128xf32> -> vector<2x8x128xf32>
    %111 = tpu.concatenate %108, %105, %110 in 2 : vector<2x8x128xf32>, vector<2x8x128xf32>, vector<2x8x128xf32> -> vector<2x8x384xf32>
    %112 = vector.shape_cast %111 : vector<2x8x384xf32> to vector<16x384xf32>
    %c3 = arith.constant 3 : index
    %c0_36 = arith.constant 0 : index
    %c0_37 = arith.constant 0 : index
    %113 = vector.load %arg4[%c3, %c0_36, %c0_37] : memref<4x384x128xf32, #tpu.memory_space<vmem>>, vector<1x384x128xf32>
    %114 = vector.shape_cast %113 : vector<1x384x128xf32> to vector<384x128xf32>
    %cst_38 = arith.constant dense<0.000000e+00> : vector<16x128xf32>
    %115 = tpu.matmul %112, %114, %cst_38 {dimension_numbers = #tpu.dot_dimension_numbers<[1], [0], [0], [1], [0, 0, 1, 1], [], []>} : vector<16x384xf32>, vector<384x128xf32>, vector<16x128xf32> -> vector<16x128xf32>
    %116 = vector.shape_cast %115 : vector<16x128xf32> to vector<2x8x128xf32>
    %117 = vector.shape_cast %39 : vector<8x1xf32> to vector<1x8x1xf32>
    %118 = vector.broadcast %117 : vector<1x8x1xf32> to vector<2x8x128xf32>
    %119 = arith.mulf %116, %118 : vector<2x8x128xf32>
    %c3_39 = arith.constant 3 : index
    %c0_40 = arith.constant 0 : index
    %c0_41 = arith.constant 0 : index
    %120 = vector.load %arg5[%c3_39, %c0_40, %c0_41] : memref<4x8x128xf32, #tpu.memory_space<vmem>>, vector<1x8x128xf32>
    %121 = vector.shape_cast %120 : vector<1x8x128xf32> to vector<8x128xf32>
    %122 = vector.shape_cast %121 : vector<8x128xf32> to vector<1x8x128xf32>
    %123 = vector.broadcast %122 : vector<1x8x128xf32> to vector<2x8x128xf32>
    %124 = arith.addf %119, %123 : vector<2x8x128xf32>
    %125 = arith.addf %82, %124 : vector<2x8x128xf32>
    %c0_42 = arith.constant 0 : index
    %c0_43 = arith.constant 0 : index
    %c0_44 = arith.constant 0 : index
    %126 = vector.load %arg6[%c0_42, %c0_43, %c0_44] : memref<2x8x128xf32, #tpu.memory_space<vmem>>, vector<2x8x128xf32>
    tpu.vector_store %arg6[%c0_42, %c0_43, %c0_44], %125 {strides = array<i32>} : memref<2x8x128xf32, #tpu.memory_space<vmem>>, vector<2x8x128xf32>,
    return
  }
  func.func @transform_0(%arg0: i32) -> (i32, i32, i32) {
    %c0_i32 = arith.constant 0 : i32
    %c0_i32_0 = arith.constant 0 : i32
    %c0_i32_1 = arith.constant 0 : i32
    return %arg0, %c0_i32, %c0_i32_0 : i32, i32, i32
  }
  func.func @transform_1(%arg0: i32) -> (i32, i32) {
    %c0_i32 = arith.constant 0 : i32
    %c0_i32_0 = arith.constant 0 : i32
    %c0_i32_1 = arith.constant 0 : i32
    return %c0_i32, %c0_i32_0 : i32, i32
  }
  func.func @transform_2(%arg0: i32) -> (i32, i32) {
    %c0_i32 = arith.constant 0 : i32
    %c0_i32_0 = arith.constant 0 : i32
    %c0_i32_1 = arith.constant 0 : i32
    return %c0_i32, %c0_i32_0 : i32, i32
  }
  func.func @transform_3(%arg0: i32) -> (i32, i32, i32) {
    %c0_i32 = arith.constant 0 : i32
    %c0_i32_0 = arith.constant 0 : i32
    %c0_i32_1 = arith.constant 0 : i32
    %c0_i32_2 = arith.constant 0 : i32
    return %c0_i32, %c0_i32_0, %c0_i32_1 : i32, i32, i32
  }
  func.func @transform_4(%arg0: i32) -> (i32, i32, i32) {
    %c0_i32 = arith.constant 0 : i32
    %c0_i32_0 = arith.constant 0 : i32
    %c0_i32_1 = arith.constant 0 : i32
    %c0_i32_2 = arith.constant 0 : i32
    return %c0_i32, %c0_i32_0, %c0_i32_1 : i32, i32, i32
  }
  func.func @transform_5(%arg0: i32) -> (i32, i32, i32) {
    %c0_i32 = arith.constant 0 : i32
    %c0_i32_0 = arith.constant 0 : i32
    %c0_i32_1 = arith.constant 0 : i32
    return %arg0, %c0_i32, %c0_i32_0 : i32, i32, i32
  }
}

</mosaic_0001>

<llo_original>
// kernel: impala_block_forward.1
$region0: #{impala_block_forward.1}
  #allocation0 [shape = 'u32[]', space=smem, size = 0x4, offset = 0x4, fixed_abs, tag = 'smem constant byte address 0x4 - core index']
  #allocation1 [shape = 'u32[144,128]{1,0:T(1,128)}', space=vmem, size = 0x12000, scoped, tag = 'internal scratch']
  %s0 = inlined_call_operand.vmem [shape: f32[2,16,64], index: 0, kind: input, shape index: {}]
  %s1 = inlined_call_operand.hbm [shape: f32[192,256], index: 1, kind: input, shape index: {}]
  %s2 = inlined_call_operand.vmem [shape: f32[1,256], index: 2, kind: input, shape index: {}]
  %s3 = inlined_call_operand.vmem [shape: f32[4,384,128], index: 3, kind: input, shape index: {}]
  %s4 = inlined_call_operand.vmem [shape: f32[4,8,128], index: 4, kind: input, shape index: {}]
  %s5 = inlined_call_operand.vmem [shape: f32[2,8,128], index: 5, kind: output, shape index: {}]
  %s6 = sld [smem:[#allocation0]]
  $region34: #{impala_block_forward.1} parent=0
    _
  %s8 = ssub.s32 1, %s6
  %s9 = scalar_select 0, %s8, %s6
  $region1: #{impala_block_forward.1} parent=0
    #allocation2 [shape = 'u8[196608]{0}', space=vmem, size = 0x30000, scoped, tag = 'input window, operand 1, single buffered']
    #allocation3 [shape = 's32[1]{0}', space=sflag, size = 0x4, scoped, tag = 'scoped memory for impala_block_forward.1']
    %10 = vsyncpa [#allocation3], 0
    // Predicated region
    $region2: #{impala_block_forward.1} parent=1 // pred_check
      _
    $region3: #{impala_block_forward.1} parent=1 // pred_check_branch
      %12 = sbr.rel (0) target = $region5
    $region4: #{impala_block_forward.1} parent=1 // pred_region
      _
    $region5: #{impala_block_forward.1} parent=1 // pred_fallthru
      _
    // Predicated region
    $region6: #{impala_block_forward.1} parent=1 // pred_check
      _
    $region7: #{impala_block_forward.1} parent=1 // pred_check_branch
      %14 = sbr.rel (0) target = $region9
    $region8: #{impala_block_forward.1} parent=1 // pred_region
      %s16 = ssub.s32 6144, 6144
      %17 = vsyncadd [#allocation3], %s16
      %s18 = sshll.u32 [#allocation2], 4
      %s19 = int_to_ptr.vmem [resolvable:$true] %s18
      %24 = dma.hbm_to_vmem [thread:$0]  %s1, 6144, %s19, [#allocation3], 256, 256, 16
    $region9: #{impala_block_forward.1} parent=1 // pred_fallthru
      _
    // Predicated region
    $region10: #{impala_block_forward.1} parent=1 // pred_check
      _
    $region11: #{impala_block_forward.1} parent=1 // pred_check_branch
      %26 = sbr.rel (0) target = $region13
    $region12: #{impala_block_forward.1} parent=1 // pred_region
      _
    $region13: #{impala_block_forward.1} parent=1 // pred_fallthru
      _
    // Predicated region
    $region14: #{impala_block_forward.1} parent=1 // pred_check
      _
    $region15: #{impala_block_forward.1} parent=1 // pred_check_branch
      %28 = sbr.rel (0) target = $region17
    $region16: #{impala_block_forward.1} parent=1 // pred_region
      _
    $region17: #{impala_block_forward.1} parent=1 // pred_fallthru
      _
    // Predicated region
    $region18: #{impala_block_forward.1} parent=1 // pred_check
      _
    $region19: #{impala_block_forward.1} parent=1 // pred_check_branch
      %30 = sbr.rel (0) target = $region21
    $region20: #{impala_block_forward.1} parent=1 // pred_region
      _
    $region21: #{impala_block_forward.1} parent=1 // pred_fallthru
      _
    // Predicated region
    $region22: #{impala_block_forward.1} parent=1 // pred_check
      _
    $region23: #{impala_block_forward.1} parent=1 // pred_check_branch
      %32 = sbr.rel (0) target = $region25
    $region24: #{impala_block_forward.1} parent=1 // pred_region
      %33 = dma.done [#allocation3], 6144
    $region25: #{impala_block_forward.1} parent=1 // pred_fallthru
      _
    %v34 = vld [vmem:[%s0] sm:$0xff]
    %v35 = vld [vmem:[%s0 + $0x8] sm:$0xff]
    %v36 = vld [vmem:[%s0 + $0x10] sm:$0xff]
    %v37 = vld [vmem:[%s0 + $0x18] sm:$0xff]
    %40 = vrot.lane.b32.xlu0 %v35, 64
    %v41 = vpop.permute.xlu0 %40
    %42 = vrot.lane.b32.xlu0 %v37, 64
    %v43 = vpop.permute.xlu0 %42
    %v48 = vrot.slane %v34, 1
    %v49 = vrot.slane %v36, 1
    %vm52 = vcmask 523264
    %v53 = vsel %vm52, %v34, %v41
    %v54 = vsel %vm52, %v36, %v43
    %55 = vrot.lane.b32.xlu0 %v48, 64
    %v56 = vpop.permute.xlu0 %55
    %57 = vrot.lane.b32.xlu0 %v49, 64
    %v58 = vpop.permute.xlu0 %57
    %v61 = vrot.slane %v35, 1
    %v62 = vrot.slane %v37, 1
    %v63 = vsel %vm52, %v35, %v56
    %v64 = vsel %vm52, %v37, %v58
    %v67 = vrot.slane %v63, 1
    %v68 = vrot.slane %v61, 1
    %v69 = vrot.slane %v64, 1
    %v70 = vrot.slane %v62, 1
    %vm75 = vcmask 1046528
    %v76 = vsel %vm75, %v53, %v67
    %v77 = vsel %vm75, %v48, %v68
    %v78 = vsel %vm75, %v54, %v69
    %v79 = vsel %vm75, %v49, %v70
    %vm80 = vcmask 1044480
    %v81 = vsel %vm80, %v67, 0.0
    %v82 = vsel %vm80, %v68, 0.0
    %v83 = vsel %vm80, %v69, 0.0
    %v84 = vsel %vm80, %v70, 0.0
    %v85 = vld [vmem:[#allocation2] sm:$0xff]
    %v86 = vld [vmem:[#allocation2 + $0x8] sm:$0xff]
    %v87 = vld [vmem:[#allocation2 + $0x10] sm:$0xff]
    %v88 = vld [vmem:[#allocation2 + $0x18] sm:$0xff]
    %v89 = vld [vmem:[#allocation2 + $0x20] sm:$0xff]
    %v90 = vld [vmem:[#allocation2 + $0x28] sm:$0xff]
    %v91 = vld [vmem:[#allocation2 + $0x30] sm:$0xff]
    %v92 = vld [vmem:[#allocation2 + $0x38] sm:$0xff]
    %v93 = vld [vmem:[#allocation2 + $0x40] sm:$0xff]
    %v94 = vld [vmem:[#allocation2 + $0x48] sm:$0xff]
    %v95 = vld [vmem:[#allocation2 + $0x50] sm:$0xff]
    %v96 = vld [vmem:[#allocation2 + $0x58] sm:$0xff]
    %v97 = vld [vmem:[#allocation2 + $0x60] sm:$0xff]
    %v98 = vld [vmem:[#allocation2 + $0x68] sm:$0xff]
    %v99 = vld [vmem:[#allocation2 + $0x70] sm:$0xff]
    %v100 = vld [vmem:[#allocation2 + $0x78] sm:$0xff]
    %v101 = vld [vmem:[#allocation2 + $0x80] sm:$0xff]
    %v102 = vld [vmem:[#allocation2 + $0x88] sm:$0xff]
    %v103 = vld [vmem:[#allocation2 + $0x90] sm:$0xff]
    %v104 = vld [vmem:[#allocation2 + $0x98] sm:$0xff]
    %v105 = vld [vmem:[#allocation2 + $0xa0] sm:$0xff]
    %v106 = vld [vmem:[#allocation2 + $0xa8] sm:$0xff]
    %v107 = vld [vmem:[#allocation2 + $0xb0] sm:$0xff]
    %v108 = vld [vmem:[#allocation2 + $0xb8] sm:$0xff]
    %v109 = vld [vmem:[#allocation2 + $0xc0] sm:$0xff]
    %v110 = vld [vmem:[#allocation2 + $0xc8] sm:$0xff]
    %v111 = vld [vmem:[#allocation2 + $0xd0] sm:$0xff]
    %v112 = vld [vmem:[#allocation2 + $0xd8] sm:$0xff]
    %v113 = vld [vmem:[#allocation2 + $0xe0] sm:$0xff]
    %v114 = vld [vmem:[#allocation2 + $0xe8] sm:$0xff]
    %v115 = vld [vmem:[#allocation2 + $0xf0] sm:$0xff]
    %v116 = vld [vmem:[#allocation2 + $0xf8] sm:$0xff]
    %v117 = vld [vmem:[#allocation2 + $0x100] sm:$0xff]
    %v118 = vld [vmem:[#allocation2 + $0x108] sm:$0xff]
    %v119 = vld [vmem:[#allocation2 + $0x110] sm:$0xff]
    %v120 = vld [vmem:[#allocation2 + $0x118] sm:$0xff]
    %v121 = vld [vmem:[#allocation2 + $0x120] sm:$0xff]
    %v122 = vld [vmem:[#allocation2 + $0x128] sm:$0xff]
    %v123 = vld [vmem:[#allocation2 + $0x130] sm:$0xff]
    %v124 = vld [vmem:[#allocation2 + $0x138] sm:$0xff]
    %v125 = vld [vmem:[#allocation2 + $0x140] sm:$0xff]
    %v126 = vld [vmem:[#allocation2 + $0x148] sm:$0xff]
    %v127 = vld [vmem:[#allocation2 + $0x150] sm:$0xff]
    %v128 = vld [vmem:[#allocation2 + $0x158] sm:$0xff]
    %v129 = vld [vmem:[#allocation2 + $0x160] sm:$0xff]
    %v130 = vld [vmem:[#allocation2 + $0x168] sm:$0xff]
    %v131 = vld [vmem:[#allocation2 + $0x170] sm:$0xff]
    %v132 = vld [vmem:[#allocation2 + $0x178] sm:$0xff]
    %v133 = vld [vmem:[%s2] sm:$0x3]
    %v135 = vlaneseq
    %v136 = vshrl.u32 %v135, 7
    %v137 = vsub.s32 0, %v136
    %v138 = vrot.slane %v133, %v137
    %v139 = vlaneseq
    %v140 = vshrl.u32 %v139, 7
    %v141 = vsub.s32 1, %v140
    %v142 = vrot.slane %v133, %v141
    %v146 = vsel %vm52, %v77, 0
    %v149 = vsel %vm52, %v82, 0
    %v152 = vsel %vm52, %v79, 0
    %v155 = vsel %vm52, %v84, 0
    %157 = vmatprep.subr.mxu0 %v86
    %158 = vmatpush1.msra.mxu0 %v85
    %159 = vmatprep.subr.mxu0 %v88
    %160 = vmatpush1.msra.mxu0 %v87
    %161 = vmatprep.subr.mxu0 %v90
    %162 = vmatpush1.msra.mxu0 %v89
    %163 = vmatprep.subr.mxu0 %v92
    %164 = vmatpush1.msra.mxu0 %v91
    %165 = vmatprep.subr.mxu0 %v94
    %166 = vmatpush1.msra.mxu0 %v93
    %167 = vmatprep.subr.mxu0 %v96
    %168 = vmatpush1.msra.mxu0 %v95
    %169 = vmatprep.subr.mxu0 %v98
    %170 = vmatpush1.msra.mxu0 %v97
    %171 = vmatprep.subr.mxu0 %v100
    %172 = vmatpush1.msra.mxu0 %v99
    %173 = vmatprep.subr.mxu0 %v102
    %174 = vmatpush1.msra.mxu0 %v101
    %175 = vmatprep.subr.mxu0 %v104
    %176 = vmatpush1.msra.mxu0 %v103
    %177 = vmatprep.subr.mxu0 %v106
    %178 = vmatpush1.msra.mxu0 %v105
    %179 = vmatprep.subr.mxu0 %v108
    %180 = vmatpush1.msra.mxu0 %v107
    %181 = vmatprep.subr.mxu0 %v110
    %182 = vmatpush1.msra.mxu0 %v109
    %183 = vmatprep.subr.mxu0 %v112
    %184 = vmatpush1.msra.mxu0 %v111
    %185 = vmatprep.subr.mxu0 %v114
    %186 = vmatpush1.msra.mxu0 %v113
    %187 = vmatprep.subr.mxu0 %v116
    %188 = vmatpush1.msra.mxu0 %v115
    %189 = vmatprep.subr.mxu0 %v118
    %190 = vmatpush1.msra.mxu0 %v117
    %191 = vmatprep.subr.mxu0 %v120
    %192 = vmatpush1.msra.mxu0 %v119
    %193 = vmatprep.subr.mxu0 %v122
    %194 = vmatpush1.msra.mxu0 %v121
    %195 = vmatprep.subr.mxu0 %v124
    %196 = vmatpush1.msra.mxu0 %v123
    %197 = vmatprep.subr.mxu0 %v126
    %198 = vmatpush1.msra.mxu0 %v125
    %199 = vmatprep.subr.mxu0 %v128
    %200 = vmatpush1.msra.mxu0 %v127
    %201 = vmatprep.subr.mxu0 %v130
    %202 = vmatpush1.msra.mxu0 %v129
    %203 = vmatprep.subr.mxu0 %v132
    %204 = vmatpush1.msra.mxu0 %v131
    %205 = vmatprep.subr.mxu0 0.0
    %206 = vmatpush1.msra.mxu0 0.0
    %207 = vmatprep.subr.mxu0 0.0
    %208 = vmatpush1.msra.mxu0 0.0
    %209 = vmatprep.subr.mxu0 0.0
    %210 = vmatpush1.msra.mxu0 0.0
    %211 = vmatprep.subr.mxu0 0.0
    %212 = vmatpush1.msra.mxu0 0.0
    %213 = vmatprep.subr.mxu0 0.0
    %214 = vmatpush1.msra.mxu0 0.0
    %215 = vmatprep.subr.mxu0 0.0
    %216 = vmatpush1.msra.mxu0 0.0
    %217 = vmatprep.subr.mxu0 0.0
    %218 = vmatpush1.msra.mxu0 0.0
    %219 = vmatprep.subr.mxu0 0.0
    %220 = vmatpush1.msra.mxu0 0.0
    %221 = vmatprep.mubr.f32.mxu0 %v146
    %222 = vmatmul.mubr.f32.gmra.mrb[0].mxu0 %v76
    %v223 = vpop.f32.mrb[0].mxu0
    %v224 = vadd.f32 %v138, %v223
    %v225 = vpop.f32.mrb[0].mxu0
    %v226 = vadd.f32 %v142, %v225
    %227 = vmatprep.mubr.f32.mxu0 %v149
    %228 = vmatmul.mubr.f32.gmra.mrb[0].mxu0 %v81
    %v229 = vpop.f32.mrb[0].mxu0
    %v230 = vadd.f32 %v138, %v229
    %v231 = vpop.f32.mrb[0].mxu0
    %v232 = vadd.f32 %v142, %v231
    %233 = vmatprep.mubr.f32.mxu0 %v152
    %234 = vmatmul.mubr.f32.gmra.mrb[0].mxu0 %v78
    %v235 = vpop.f32.mrb[0].mxu0
    %v236 = vadd.f32 %v138, %v235
    %v237 = vpop.f32.mrb[0].mxu0
    %v238 = vadd.f32 %v142, %v237
    %239 = vmatprep.mubr.f32.mxu0 %v155
    %240 = vmatmul.mubr.f32.gmra.mrb[0].mxu0 %v83
    %v241 = vpop.f32.mrb[0].mxu0
    %v242 = vadd.f32 %v138, %v241
    %v243 = vpop.f32.mrb[0].mxu0
    %v244 = vadd.f32 %v142, %v243
    %245 = vdwg.mxu0
    %vm254 = vcmask 1040384
    %v255 = vrot.slane %v224, 7
    %v256 = vrot.slane %v230, 7
    %v257 = vsel %vm254, %v255, %v256
    %v258 = vrot.slane %v226, 7
    %v259 = vrot.slane %v232, 7
    %v260 = vsel %vm254, %v258, %v259
    %v261 = vrot.slane %v236, 7
    %v262 = vrot.slane %v242, 7
    %v263 = vsel %vm254, %v261, %v262
    %v264 = vrot.slane %v238, 7
    %v265 = vrot.slane %v244, 7
    %v266 = vsel %vm254, %v264, %v265
    %v271 = vmax.f32 %v224, %v257
    %v272 = vmax.f32 %v226, %v260
    %v273 = vmax.f32 %v236, %v263
    %v274 = vmax.f32 %v238, %v266
    %v275 = vrot.slane %v224, 1
    %v276 = vrot.slane %v226, 1
    %v277 = vrot.slane %v236, 1
    %v278 = vrot.slane %v238, 1
    %v283 = vmax.f32 %v271, %v275
    %v284 = vmax.f32 %v272, %v276
    %v285 = vmax.f32 %v273, %v277
    %v286 = vmax.f32 %v274, %v278
    %v287 = vmax.f32 %v283, %v284
    %v288 = vmax.f32 %v285, %v286
    %291 = vrot.lane.b32.xlu0 %v283, 112
    %v292 = vpop.permute.xlu0 %291
    %293 = vrot.lane.b32.xlu0 %v285, 112
    %v294 = vpop.permute.xlu0 %293
    %v297 = vmax.f32 %v287, %v292
    %v298 = vmax.f32 %v288, %v294
    %vm299 = vcmask 785408
    %v300 = vsel %vm299, %v297, 0.0
    %v301 = vsel %vm299, %v298, 0.0
    %v304 = vrot.slane %v300, 7
    %v305 = vrot.slane %v301, 7
    %v308 = vsel %vm254, 0.0, %v304
    %v309 = vsel %vm254, 0.0, %v305
    %v310 = vsel %vm75, %v308, 0.0
    %v311 = vsel %vm75, %v309, 0.0
    %v312 = vlaneseq
    %v313 = vshrl.u32 %v312, 7
    %vm314 = vcmp.ge.s32.totalorder %v313, 1
    %vm315 = vcmp.le.s32.totalorder %v313, 6
    %vm316 = vmand %vm314, %vm315
    %v317 = vsel %vm316, 1, 0
    %v318 = vcvt.s32.f32 %v317
    %v319 = vmax.f32 %v310, 0.0
    %v320 = vmax.f32 %v311, 0.0
    %v323 = vrot.slane %v319, 7
    %v324 = vrot.slane %v320, 7
    %v327 = vsel %vm254, 0.0, %v323
    %v328 = vsel %vm254, 0.0, %v324
    %v329 = vrot.slane %v319, 1
    %v330 = vrot.slane %v320, 1
    %v333 = vsel %vm75, %v329, 0.0
    %v334 = vsel %vm75, %v330, 0.0
    %v335 = vld [vmem:[%s3] sm:$0xff]
    %v336 = vld [vmem:[%s3 + $0x8] sm:$0xff]
    %v337 = vld [vmem:[%s3 + $0x10] sm:$0xff]
    %v338 = vld [vmem:[%s3 + $0x18] sm:$0xff]
    %v339 = vld [vmem:[%s3 + $0x20] sm:$0xff]
    %v340 = vld [vmem:[%s3 + $0x28] sm:$0xff]
    %v341 = vld [vmem:[%s3 + $0x30] sm:$0xff]
    %v342 = vld [vmem:[%s3 + $0x38] sm:$0xff]
    %v343 = vld [vmem:[%s3 + $0x40] sm:$0xff]
    %v344 = vld [vmem:[%s3 + $0x48] sm:$0xff]
    %v345 = vld [vmem:[%s3 + $0x50] sm:$0xff]
    %v346 = vld [vmem:[%s3 + $0x58] sm:$0xff]
    %v347 = vld [vmem:[%s3 + $0x60] sm:$0xff]
    %v348 = vld [vmem:[%s3 + $0x68] sm:$0xff]
    %v349 = vld [vmem:[%s3 + $0x70] sm:$0xff]
    %v350 = vld [vmem:[%s3 + $0x78] sm:$0xff]
    %v351 = vld [vmem:[%s3 + $0x80] sm:$0xff]
    %v352 = vld [vmem:[%s3 + $0x88] sm:$0xff]
    %v353 = vld [vmem:[%s3 + $0x90] sm:$0xff]
    %v354 = vld [vmem:[%s3 + $0x98] sm:$0xff]
    %v355 = vld [vmem:[%s3 + $0xa0] sm:$0xff]
    %v356 = vld [vmem:[%s3 + $0xa8] sm:$0xff]
    %v357 = vld [vmem:[%s3 + $0xb0] sm:$0xff]
    %v358 = vld [vmem:[%s3 + $0xb8] sm:$0xff]
    %v359 = vld [vmem:[%s3 + $0xc0] sm:$0xff]
    %v360 = vld [vmem:[%s3 + $0xc8] sm:$0xff]
    %v361 = vld [vmem:[%s3 + $0xd0] sm:$0xff]
    %v362 = vld [vmem:[%s3 + $0xd8] sm:$0xff]
    %v363 = vld [vmem:[%s3 + $0xe0] sm:$0xff]
    %v364 = vld [vmem:[%s3 + $0xe8] sm:$0xff]
    %v365 = vld [vmem:[%s3 + $0xf0] sm:$0xff]
    %v366 = vld [vmem:[%s3 + $0xf8] sm:$0xff]
    %v367 = vld [vmem:[%s3 + $0x100] sm:$0xff]
    %v368 = vld [vmem:[%s3 + $0x108] sm:$0xff]
    %v369 = vld [vmem:[%s3 + $0x110] sm:$0xff]
    %v370 = vld [vmem:[%s3 + $0x118] sm:$0xff]
    %v371 = vld [vmem:[%s3 + $0x120] sm:$0xff]
    %v372 = vld [vmem:[%s3 + $0x128] sm:$0xff]
    %v373 = vld [vmem:[%s3 + $0x130] sm:$0xff]
    %v374 = vld [vmem:[%s3 + $0x138] sm:$0xff]
    %v375 = vld [vmem:[%s3 + $0x140] sm:$0xff]
    %v376 = vld [vmem:[%s3 + $0x148] sm:$0xff]
    %v377 = vld [vmem:[%s3 + $0x150] sm:$0xff]
    %v378 = vld [vmem:[%s3 + $0x158] sm:$0xff]
    %v379 = vld [vmem:[%s3 + $0x160] sm:$0xff]
    %v380 = vld [vmem:[%s3 + $0x168] sm:$0xff]
    %v381 = vld [vmem:[%s3 + $0x170] sm:$0xff]
    %v382 = vld [vmem:[%s3 + $0x178] sm:$0xff]
    %383 = vmatprep.subr.mxu0 0.0
    %384 = vmatpush1.msra.mxu0 %v335
    %385 = vmatprep.subr.mxu0 0.0
    %386 = vmatpush1.msra.mxu0 %v336
    %387 = vmatprep.subr.mxu0 0.0
    %388 = vmatpush1.msra.mxu0 %v337
    %389 = vmatprep.subr.mxu0 0.0
    %390 = vmatpush1.msra.mxu0 %v338
    %391 = vmatprep.subr.mxu0 0.0
    %392 = vmatpush1.msra.mxu0 %v339
    %393 = vmatprep.subr.mxu0 0.0
    %394 = vmatpush1.msra.mxu0 %v340
    %395 = vmatprep.subr.mxu0 0.0
    %396 = vmatpush1.msra.mxu0 %v341
    %397 = vmatprep.subr.mxu0 0.0
    %398 = vmatpush1.msra.mxu0 %v342
    %399 = vmatprep.subr.mxu0 0.0
    %400 = vmatpush1.msra.mxu0 %v343
    %401 = vmatprep.subr.mxu0 0.0
    %402 = vmatpush1.msra.mxu0 %v344
    %403 = vmatprep.subr.mxu0 0.0
    %404 = vmatpush1.msra.mxu0 %v345
    %405 = vmatprep.subr.mxu0 0.0
    %406 = vmatpush1.msra.mxu0 %v346
    %407 = vmatprep.subr.mxu0 0.0
    %408 = vmatpush1.msra.mxu0 %v347
    %409 = vmatprep.subr.mxu0 0.0
    %410 = vmatpush1.msra.mxu0 %v348
    %411 = vmatprep.subr.mxu0 0.0
    %412 = vmatpush1.msra.mxu0 %v349
    %413 = vmatprep.subr.mxu0 0.0
    %414 = vmatpush1.msra.mxu0 %v350
    %415 = vmatprep.subr.mxu0 0.0
    %416 = vmatpush1.msra.mxu0 %v351
    %417 = vmatprep.subr.mxu0 0.0
    %418 = vmatpush1.msra.mxu0 %v352
    %419 = vmatprep.subr.mxu0 0.0
    %420 = vmatpush1.msra.mxu0 %v353
    %421 = vmatprep.subr.mxu0 0.0
    %422 = vmatpush1.msra.mxu0 %v354
    %423 = vmatprep.subr.mxu0 0.0
    %424 = vmatpush1.msra.mxu0 %v355
    %425 = vmatprep.subr.mxu0 0.0
    %426 = vmatpush1.msra.mxu0 %v356
    %427 = vmatprep.subr.mxu0 0.0
    %428 = vmatpush1.msra.mxu0 %v357
    %429 = vmatprep.subr.mxu0 0.0
    %430 = vmatpush1.msra.mxu0 %v358
    %431 = vmatprep.subr.mxu0 0.0
    %432 = vmatpush1.msra.mxu0 %v359
    %433 = vmatprep.subr.mxu0 0.0
    %434 = vmatpush1.msra.mxu0 %v360
    %435 = vmatprep.subr.mxu0 0.0
    %436 = vmatpush1.msra.mxu0 %v361
    %437 = vmatprep.subr.mxu0 0.0
    %438 = vmatpush1.msra.mxu0 %v362
    %439 = vmatprep.subr.mxu0 0.0
    %440 = vmatpush1.msra.mxu0 %v363
    %441 = vmatprep.subr.mxu0 0.0
    %442 = vmatpush1.msra.mxu0 %v364
    %443 = vmatprep.subr.mxu0 0.0
    %444 = vmatpush1.msra.mxu0 %v365
    %445 = vmatprep.subr.mxu0 0.0
    %446 = vmatpush1.msra.mxu0 %v366
    %447 = vmatprep.mubr.f32.mxu0 %v319
    %448 = vmatmul.mubr.f32.gmra.mrb[0].mxu0 %v327
    %v449 = vpop.f32.mrb[0].mxu0
    %v450 = vadd.f32 0.0, %v449
    %v451 = vpop.f32.mrb[0].mxu0
    %452 = vmatprep.mubr.f32.mxu0 %v320
    %453 = vmatmul.mubr.f32.gmra.mrb[0].mxu0 %v328
    %v454 = vpop.f32.mrb[0].mxu0
    %v455 = vadd.f32 0.0, %v454
    %v456 = vpop.f32.mrb[0].mxu0
    %457 = vdwg.mxu0
    %458 = vmatprep.subr.mxu0 0.0
    %459 = vmatpush1.msra.mxu0 %v367
    %460 = vmatprep.subr.mxu0 0.0
    %461 = vmatpush1.msra.mxu0 %v368
    %462 = vmatprep.subr.mxu0 0.0
    %463 = vmatpush1.msra.mxu0 %v369
    %464 = vmatprep.subr.mxu0 0.0
    %465 = vmatpush1.msra.mxu0 %v370
    %466 = vmatprep.subr.mxu0 0.0
    %467 = vmatpush1.msra.mxu0 %v371
    %468 = vmatprep.subr.mxu0 0.0
    %469 = vmatpush1.msra.mxu0 %v372
    %470 = vmatprep.subr.mxu0 0.0
    %471 = vmatpush1.msra.mxu0 %v373
    %472 = vmatprep.subr.mxu0 0.0
    %473 = vmatpush1.msra.mxu0 %v374
    %474 = vmatprep.subr.mxu0 0.0
    %475 = vmatpush1.msra.mxu0 %v375
    %476 = vmatprep.subr.mxu0 0.0
    %477 = vmatpush1.msra.mxu0 %v376
    %478 = vmatprep.subr.mxu0 0.0
    %479 = vmatpush1.msra.mxu0 %v377
    %480 = vmatprep.subr.mxu0 0.0
    %481 = vmatpush1.msra.mxu0 %v378
    %482 = vmatprep.subr.mxu0 0.0
    %483 = vmatpush1.msra.mxu0 %v379
    %484 = vmatprep.subr.mxu0 0.0
    %485 = vmatpush1.msra.mxu0 %v380
    %486 = vmatprep.subr.mxu0 0.0
    %487 = vmatpush1.msra.mxu0 %v381
    %488 = vmatprep.subr.mxu0 0.0
    %489 = vmatpush1.msra.mxu0 %v382
    %490 = vmatprep.subr.mxu0 0.0
    %491 = vmatpush1.msra.mxu0 0.0
    %492 = vmatprep.subr.mxu0 0.0
    %493 = vmatpush1.msra.mxu0 0.0
    %494 = vmatprep.subr.mxu0 0.0
    %495 = vmatpush1.msra.mxu0 0.0
    %496 = vmatprep.subr.mxu0 0.0
    %497 = vmatpush1.msra.mxu0 0.0
    %498 = vmatprep.subr.mxu0 0.0
    %499 = vmatpush1.msra.mxu0 0.0
    %500 = vmatprep.subr.mxu0 0.0
    %501 = vmatpush1.msra.mxu0 0.0
    %502 = vmatprep.subr.mxu0 0.0
    %503 = vmatpush1.msra.mxu0 0.0
    %504 = vmatprep.subr.mxu0 0.0
    %505 = vmatpush1.msra.mxu0 0.0
    %506 = vmatprep.subr.mxu0 0.0
    %507 = vmatpush1.msra.mxu0 0.0
    %508 = vmatprep.subr.mxu0 0.0
    %509 = vmatpush1.msra.mxu0 0.0
    %510 = vmatprep.subr.mxu0 0.0
    %511 = vmatpush1.msra.mxu0 0.0
    %512 = vmatprep.subr.mxu0 0.0
    %513 = vmatpush1.msra.mxu0 0.0
    %514 = vmatprep.subr.mxu0 0.0
    %515 = vmatpush1.msra.mxu0 0.0
    %516 = vmatprep.subr.mxu0 0.0
    %517 = vmatpush1.msra.mxu0 0.0
    %518 = vmatprep.subr.mxu0 0.0
    %519 = vmatpush1.msra.mxu0 0.0
    %520 = vmatprep.subr.mxu0 0.0
    %521 = vmatpush1.msra.mxu0 0.0
    %522 = vmatprep.mubr.f32.mxu0 0.0
    %523 = vmatmul.mubr.f32.gmra.mrb[0].mxu0 %v333
    %v524 = vpop.f32.mrb[0].mxu0
    %v525 = vadd.f32 %v450, %v524
    %v526 = vpop.f32.mrb[0].mxu0
    %527 = vmatprep.mubr.f32.mxu0 0.0
    %528 = vmatmul.mubr.f32.gmra.mrb[0].mxu0 %v334
    %v529 = vpop.f32.mrb[0].mxu0
    %v530 = vadd.f32 %v455, %v529
    %v531 = vpop.f32.mrb[0].mxu0
    %532 = vdwg.mxu0
    %v533 = vmul.f32 %v525, %v318
    %v534 = vmul.f32 %v530, %v318
    %v535 = vld [vmem:[%s4] sm:$0xff]
    %v536 = vadd.f32 %v533, %v535
    %v537 = vadd.f32 %v534, %v535
    %v538 = vmax.f32 %v536, 0.0
    %v539 = vmax.f32 %v537, 0.0
    %v542 = vrot.slane %v538, 7
    %v543 = vrot.slane %v539, 7
    %v546 = vsel %vm254, 0.0, %v542
    %v547 = vsel %vm254, 0.0, %v543
    %v548 = vrot.slane %v538, 1
    %v549 = vrot.slane %v539, 1
    %v552 = vsel %vm75, %v548, 0.0
    %v553 = vsel %vm75, %v549, 0.0
    %s554 = scalar_lea.vmem %s3, 384
    %v555 = vld [vmem:[%s554] sm:$0xff]
    %v556 = vld [vmem:[%s554 + $0x8] sm:$0xff]
    %v557 = vld [vmem:[%s554 + $0x10] sm:$0xff]
    %v558 = vld [vmem:[%s554 + $0x18] sm:$0xff]
    %v559 = vld [vmem:[%s554 + $0x20] sm:$0xff]
    %v560 = vld [vmem:[%s554 + $0x28] sm:$0xff]
    %v561 = vld [vmem:[%s554 + $0x30] sm:$0xff]
    %v562 = vld [vmem:[%s554 + $0x38] sm:$0xff]
    %v563 = vld [vmem:[%s554 + $0x40] sm:$0xff]
    %v564 = vld [vmem:[%s554 + $0x48] sm:$0xff]
    %v565 = vld [vmem:[%s554 + $0x50] sm:$0xff]
    %v566 = vld [vmem:[%s554 + $0x58] sm:$0xff]
    %v567 = vld [vmem:[%s554 + $0x60] sm:$0xff]
    %v568 = vld [vmem:[%s554 + $0x68] sm:$0xff]
    %v569 = vld [vmem:[%s554 + $0x70] sm:$0xff]
    %v570 = vld [vmem:[%s554 + $0x78] sm:$0xff]
    %v571 = vld [vmem:[%s554 + $0x80] sm:$0xff]
    %v572 = vld [vmem:[%s554 + $0x88] sm:$0xff]
    %v573 = vld [vmem:[%s554 + $0x90] sm:$0xff]
    %v574 = vld [vmem:[%s554 + $0x98] sm:$0xff]
    %v575 = vld [vmem:[%s554 + $0xa0] sm:$0xff]
    %v576 = vld [vmem:[%s554 + $0xa8] sm:$0xff]
    %v577 = vld [vmem:[%s554 + $0xb0] sm:$0xff]
    %v578 = vld [vmem:[%s554 + $0xb8] sm:$0xff]
    %v579 = vld [vmem:[%s554 + $0xc0] sm:$0xff]
    %v580 = vld [vmem:[%s554 + $0xc8] sm:$0xff]
    %v581 = vld [vmem:[%s554 + $0xd0] sm:$0xff]
    %v582 = vld [vmem:[%s554 + $0xd8] sm:$0xff]
    %v583 = vld [vmem:[%s554 + $0xe0] sm:$0xff]
    %v584 = vld [vmem:[%s554 + $0xe8] sm:$0xff]
    %v585 = vld [vmem:[%s554 + $0xf0] sm:$0xff]
    %v586 = vld [vmem:[%s554 + $0xf8] sm:$0xff]
    %v587 = vld [vmem:[%s554 + $0x100] sm:$0xff]
    %v588 = vld [vmem:[%s554 + $0x108] sm:$0xff]
    %v589 = vld [vmem:[%s554 + $0x110] sm:$0xff]
    %v590 = vld [vmem:[%s554 + $0x118] sm:$0xff]
    %v591 = vld [vmem:[%s554 + $0x120] sm:$0xff]
    %v592 = vld [vmem:[%s554 + $0x128] sm:$0xff]
    %v593 = vld [vmem:[%s554 + $0x130] sm:$0xff]
    %v594 = vld [vmem:[%s554 + $0x138] sm:$0xff]
    %v595 = vld [vmem:[%s554 + $0x140] sm:$0xff]
    %v596 = vld [vmem:[%s554 + $0x148] sm:$0xff]
    %v597 = vld [vmem:[%s554 + $0x150] sm:$0xff]
    %v598 = vld [vmem:[%s554 + $0x158] sm:$0xff]
    %v599 = vld [vmem:[%s554 + $0x160] sm:$0xff]
    %v600 = vld [vmem:[%s554 + $0x168] sm:$0xff]
    %v601 = vld [vmem:[%s554 + $0x170] sm:$0xff]
    %v602 = vld [vmem:[%s554 + $0x178] sm:$0xff]
    %603 = vmatprep.subr.mxu0 0.0
    %604 = vmatpush1.msra.mxu0 %v555
    %605 = vmatprep.subr.mxu0 0.0
    %606 = vmatpush1.msra.mxu0 %v556
    %607 = vmatprep.subr.mxu0 0.0
    %608 = vmatpush1.msra.mxu0 %v557
    %609 = vmatprep.subr.mxu0 0.0
    %610 = vmatpush1.msra.mxu0 %v558
    %611 = vmatprep.subr.mxu0 0.0
    %612 = vmatpush1.msra.mxu0 %v559
    %613 = vmatprep.subr.mxu0 0.0
    %614 = vmatpush1.msra.mxu0 %v560
    %615 = vmatprep.subr.mxu0 0.0
    %616 = vmatpush1.msra.mxu0 %v561
    %617 = vmatprep.subr.mxu0 0.0
    %618 = vmatpush1.msra.mxu0 %v562
    %619 = vmatprep.subr.mxu0 0.0
    %620 = vmatpush1.msra.mxu0 %v563
    %621 = vmatprep.subr.mxu0 0.0
    %622 = vmatpush1.msra.mxu0 %v564
    %623 = vmatprep.subr.mxu0 0.0
    %624 = vmatpush1.msra.mxu0 %v565
    %625 = vmatprep.subr.mxu0 0.0
    %626 = vmatpush1.msra.mxu0 %v566
    %627 = vmatprep.subr.mxu0 0.0
    %628 = vmatpush1.msra.mxu0 %v567
    %629 = vmatprep.subr.mxu0 0.0
    %630 = vmatpush1.msra.mxu0 %v568
    %631 = vmatprep.subr.mxu0 0.0
    %632 = vmatpush1.msra.mxu0 %v569
    %633 = vmatprep.subr.mxu0 0.0
    %634 = vmatpush1.msra.mxu0 %v570
    %635 = vmatprep.subr.mxu0 0.0
    %636 = vmatpush1.msra.mxu0 %v571
    %637 = vmatprep.subr.mxu0 0.0
    %638 = vmatpush1.msra.mxu0 %v572
    %639 = vmatprep.subr.mxu0 0.0
    %640 = vmatpush1.msra.mxu0 %v573
    %641 = vmatprep.subr.mxu0 0.0
    %642 = vmatpush1.msra.mxu0 %v574
    %643 = vmatprep.subr.mxu0 0.0
    %644 = vmatpush1.msra.mxu0 %v575
    %645 = vmatprep.subr.mxu0 0.0
    %646 = vmatpush1.msra.mxu0 %v576
    %647 = vmatprep.subr.mxu0 0.0
    %648 = vmatpush1.msra.mxu0 %v577
    %649 = vmatprep.subr.mxu0 0.0
    %650 = vmatpush1.msra.mxu0 %v578
    %651 = vmatprep.subr.mxu0 0.0
    %652 = vmatpush1.msra.mxu0 %v579
    %653 = vmatprep.subr.mxu0 0.0
    %654 = vmatpush1.msra.mxu0 %v580
    %655 = vmatprep.subr.mxu0 0.0
    %656 = vmatpush1.msra.mxu0 %v581
    %657 = vmatprep.subr.mxu0 0.0
    %658 = vmatpush1.msra.mxu0 %v582
    %659 = vmatprep.subr.mxu0 0.0
    %660 = vmatpush1.msra.mxu0 %v583
    %661 = vmatprep.subr.mxu0 0.0
    %662 = vmatpush1.msra.mxu0 %v584
    %663 = vmatprep.subr.mxu0 0.0
    %664 = vmatpush1.msra.mxu0 %v585
    %665 = vmatprep.subr.mxu0 0.0
    %666 = vmatpush1.msra.mxu0 %v586
    %667 = vmatprep.mubr.f32.mxu0 %v538
    %668 = vmatmul.mubr.f32.gmra.mrb[0].mxu0 %v546
    %v669 = vpop.f32.mrb[0].mxu0
    %v670 = vadd.f32 0.0, %v669
    %v671 = vpop.f32.mrb[0].mxu0
    %672 = vmatprep.mubr.f32.mxu0 %v539
    %673 = vmatmul.mubr.f32.gmra.mrb[0].mxu0 %v547
    %v674 = vpop.f32.mrb[0].mxu0
    %v675 = vadd.f32 0.0, %v674
    %v676 = vpop.f32.mrb[0].mxu0
    %677 = vdwg.mxu0
    %678 = vmatprep.subr.mxu0 0.0
    %679 = vmatpush1.msra.mxu0 %v587
    %680 = vmatprep.subr.mxu0 0.0
    %681 = vmatpush1.msra.mxu0 %v588
    %682 = vmatprep.subr.mxu0 0.0
    %683 = vmatpush1.msra.mxu0 %v589
    %684 = vmatprep.subr.mxu0 0.0
    %685 = vmatpush1.msra.mxu0 %v590
    %686 = vmatprep.subr.mxu0 0.0
    %687 = vmatpush1.msra.mxu0 %v591
    %688 = vmatprep.subr.mxu0 0.0
    %689 = vmatpush1.msra.mxu0 %v592
    %690 = vmatprep.subr.mxu0 0.0
    %691 = vmatpush1.msra.mxu0 %v593
    %692 = vmatprep.subr.mxu0 0.0
    %693 = vmatpush1.msra.mxu0 %v594
    %694 = vmatprep.subr.mxu0 0.0
    %695 = vmatpush1.msra.mxu0 %v595
    %696 = vmatprep.subr.mxu0 0.0
    %697 = vmatpush1.msra.mxu0 %v596
    %698 = vmatprep.subr.mxu0 0.0
    %699 = vmatpush1.msra.mxu0 %v597
    %700 = vmatprep.subr.mxu0 0.0
    %701 = vmatpush1.msra.mxu0 %v598
    %702 = vmatprep.subr.mxu0 0.0
    %703 = vmatpush1.msra.mxu0 %v599
    %704 = vmatprep.subr.mxu0 0.0
    %705 = vmatpush1.msra.mxu0 %v600
    %706 = vmatprep.subr.mxu0 0.0
    %707 = vmatpush1.msra.mxu0 %v601
    %708 = vmatprep.subr.mxu0 0.0
    %709 = vmatpush1.msra.mxu0 %v602
    %710 = vmatprep.subr.mxu0 0.0
    %711 = vmatpush1.msra.mxu0 0.0
    %712 = vmatprep.subr.mxu0 0.0
    %713 = vmatpush1.msra.mxu0 0.0
    %714 = vmatprep.subr.mxu0 0.0
    %715 = vmatpush1.msra.mxu0 0.0
    %716 = vmatprep.subr.mxu0 0.0
    %717 = vmatpush1.msra.mxu0 0.0
    %718 = vmatprep.subr.mxu0 0.0
    %719 = vmatpush1.msra.mxu0 0.0
    %720 = vmatprep.subr.mxu0 0.0
    %721 = vmatpush1.msra.mxu0 0.0
    %722 = vmatprep.subr.mxu0 0.0
    %723 = vmatpush1.msra.mxu0 0.0
    %724 = vmatprep.subr.mxu0 0.0
    %725 = vmatpush1.msra.mxu0 0.0
    %726 = vmatprep.subr.mxu0 0.0
    %727 = vmatpush1.msra.mxu0 0.0
    %728 = vmatprep.subr.mxu0 0.0
    %729 = vmatpush1.msra.mxu0 0.0
    %730 = vmatprep.subr.mxu0 0.0
    %731 = vmatpush1.msra.mxu0 0.0
    %732 = vmatprep.subr.mxu0 0.0
    %733 = vmatpush1.msra.mxu0 0.0
    %734 = vmatprep.subr.mxu0 0.0
    %735 = vmatpush1.msra.mxu0 0.0
    %736 = vmatprep.subr.mxu0 0.0
    %737 = vmatpush1.msra.mxu0 0.0
    %738 = vmatprep.subr.mxu0 0.0
    %739 = vmatpush1.msra.mxu0 0.0
    %740 = vmatprep.subr.mxu0 0.0
    %741 = vmatpush1.msra.mxu0 0.0
    %742 = vmatprep.mubr.f32.mxu0 0.0
    %743 = vmatmul.mubr.f32.gmra.mrb[0].mxu0 %v552
    %v744 = vpop.f32.mrb[0].mxu0
    %v745 = vadd.f32 %v670, %v744
    %v746 = vpop.f32.mrb[0].mxu0
    %747 = vmatprep.mubr.f32.mxu0 0.0
    %748 = vmatmul.mubr.f32.gmra.mrb[0].mxu0 %v553
    %v749 = vpop.f32.mrb[0].mxu0
    %v750 = vadd.f32 %v675, %v749
    %v751 = vpop.f32.mrb[0].mxu0
    %752 = vdwg.mxu0
    %v753 = vmul.f32 %v745, %v318
    %v754 = vmul.f32 %v750, %v318
    %s755 = scalar_lea.vmem %s4, 8
    %v756 = vld [vmem:[%s755] sm:$0xff]
    %v757 = vadd.f32 %v753, %v756
    %v758 = vadd.f32 %v754, %v756
    %v759 = vadd.f32 %v310, %v757
    %v760 = vadd.f32 %v311, %v758
    %v761 = vmax.f32 %v759, 0.0
    %v762 = vmax.f32 %v760, 0.0
    %v765 = vrot.slane %v761, 7
    %v766 = vrot.slane %v762, 7
    %v769 = vsel %vm254, 0.0, %v765
    %v770 = vsel %vm254, 0.0, %v766
    %v771 = vrot.slane %v761, 1
    %v772 = vrot.slane %v762, 1
    %v775 = vsel %vm75, %v771, 0.0
    %v776 = vsel %vm75, %v772, 0.0
    %s777 = scalar_lea.vmem %s3, 768
    %v778 = vld [vmem:[%s777] sm:$0xff]
    %v779 = vld [vmem:[%s777 + $0x8] sm:$0xff]
    %v780 = vld [vmem:[%s777 + $0x10] sm:$0xff]
    %v781 = vld [vmem:[%s777 + $0x18] sm:$0xff]
    %v782 = vld [vmem:[%s777 + $0x20] sm:$0xff]
    %v783 = vld [vmem:[%s777 + $0x28] sm:$0xff]
    %v784 = vld [vmem:[%s777 + $0x30] sm:$0xff]
    %v785 = vld [vmem:[%s777 + $0x38] sm:$0xff]
    %v786 = vld [vmem:[%s777 + $0x40] sm:$0xff]
    %v787 = vld [vmem:[%s777 + $0x48] sm:$0xff]
    %v788 = vld [vmem:[%s777 + $0x50] sm:$0xff]
    %v789 = vld [vmem:[%s777 + $0x58] sm:$0xff]
    %v790 = vld [vmem:[%s777 + $0x60] sm:$0xff]
    %v791 = vld [vmem:[%s777 + $0x68] sm:$0xff]
    %v792 = vld [vmem:[%s777 + $0x70] sm:$0xff]
    %v793 = vld [vmem:[%s777 + $0x78] sm:$0xff]
    %v794 = vld [vmem:[%s777 + $0x80] sm:$0xff]
    %v795 = vld [vmem:[%s777 + $0x88] sm:$0xff]
    %v796 = vld [vmem:[%s777 + $0x90] sm:$0xff]
    %v797 = vld [vmem:[%s777 + $0x98] sm:$0xff]
    %v798 = vld [vmem:[%s777 + $0xa0] sm:$0xff]
    %v799 = vld [vmem:[%s777 + $0xa8] sm:$0xff]
    %v800 = vld [vmem:[%s777 + $0xb0] sm:$0xff]
    %v801 = vld [vmem:[%s777 + $0xb8] sm:$0xff]
    %v802 = vld [vmem:[%s777 + $0xc0] sm:$0xff]
    %v803 = vld [vmem:[%s777 + $0xc8] sm:$0xff]
    %v804 = vld [vmem:[%s777 + $0xd0] sm:$0xff]
    %v805 = vld [vmem:[%s777 + $0xd8] sm:$0xff]
    %v806 = vld [vmem:[%s777 + $0xe0] sm:$0xff]
    %v807 = vld [vmem:[%s777 + $0xe8] sm:$0xff]
    %v808 = vld [vmem:[%s777 + $0xf0] sm:$0xff]
    %v809 = vld [vmem:[%s777 + $0xf8] sm:$0xff]
    %v810 = vld [vmem:[%s777 + $0x100] sm:$0xff]
    %v811 = vld [vmem:[%s777 + $0x108] sm:$0xff]
    %v812 = vld [vmem:[%s777 + $0x110] sm:$0xff]
    %v813 = vld [vmem:[%s777 + $0x118] sm:$0xff]
    %v814 = vld [vmem:[%s777 + $0x120] sm:$0xff]
    %v815 = vld [vmem:[%s777 + $0x128] sm:$0xff]
    %v816 = vld [vmem:[%s777 + $0x130] sm:$0xff]
    %v817 = vld [vmem:[%s777 + $0x138] sm:$0xff]
    %v818 = vld [vmem:[%s777 + $0x140] sm:$0xff]
    %v819 = vld [vmem:[%s777 + $0x148] sm:$0xff]
    %v820 = vld [vmem:[%s777 + $0x150] sm:$0xff]
    %v821 = vld [vmem:[%s777 + $0x158] sm:$0xff]
    %v822 = vld [vmem:[%s777 + $0x160] sm:$0xff]
    %v823 = vld [vmem:[%s777 + $0x168] sm:$0xff]
    %v824 = vld [vmem:[%s777 + $0x170] sm:$0xff]
    %v825 = vld [vmem:[%s777 + $0x178] sm:$0xff]
    %826 = vmatprep.subr.mxu0 0.0
    %827 = vmatpush1.msra.mxu0 %v778
    %828 = vmatprep.subr.mxu0 0.0
    %829 = vmatpush1.msra.mxu0 %v779
    %830 = vmatprep.subr.mxu0 0.0
    %831 = vmatpush1.msra.mxu0 %v780
    %832 = vmatprep.subr.mxu0 0.0
    %833 = vmatpush1.msra.mxu0 %v781
    %834 = vmatprep.subr.mxu0 0.0
    %835 = vmatpush1.msra.mxu0 %v782
    %836 = vmatprep.subr.mxu0 0.0
    %837 = vmatpush1.msra.mxu0 %v783
    %838 = vmatprep.subr.mxu0 0.0
    %839 = vmatpush1.msra.mxu0 %v784
    %840 = vmatprep.subr.mxu0 0.0
    %841 = vmatpush1.msra.mxu0 %v785
    %842 = vmatprep.subr.mxu0 0.0
    %843 = vmatpush1.msra.mxu0 %v786
    %844 = vmatprep.subr.mxu0 0.0
    %845 = vmatpush1.msra.mxu0 %v787
    %846 = vmatprep.subr.mxu0 0.0
    %847 = vmatpush1.msra.mxu0 %v788
    %848 = vmatprep.subr.mxu0 0.0
    %849 = vmatpush1.msra.mxu0 %v789
    %850 = vmatprep.subr.mxu0 0.0
    %851 = vmatpush1.msra.mxu0 %v790
    %852 = vmatprep.subr.mxu0 0.0
    %853 = vmatpush1.msra.mxu0 %v791
    %854 = vmatprep.subr.mxu0 0.0
    %855 = vmatpush1.msra.mxu0 %v792
    %856 = vmatprep.subr.mxu0 0.0
    %857 = vmatpush1.msra.mxu0 %v793
    %858 = vmatprep.subr.mxu0 0.0
    %859 = vmatpush1.msra.mxu0 %v794
    %860 = vmatprep.subr.mxu0 0.0
    %861 = vmatpush1.msra.mxu0 %v795
    %862 = vmatprep.subr.mxu0 0.0
    %863 = vmatpush1.msra.mxu0 %v796
    %864 = vmatprep.subr.mxu0 0.0
    %865 = vmatpush1.msra.mxu0 %v797
    %866 = vmatprep.subr.mxu0 0.0
    %867 = vmatpush1.msra.mxu0 %v798
    %868 = vmatprep.subr.mxu0 0.0
    %869 = vmatpush1.msra.mxu0 %v799
    %870 = vmatprep.subr.mxu0 0.0
    %871 = vmatpush1.msra.mxu0 %v800
    %872 = vmatprep.subr.mxu0 0.0
    %873 = vmatpush1.msra.mxu0 %v801
    %874 = vmatprep.subr.mxu0 0.0
    %875 = vmatpush1.msra.mxu0 %v802
    %876 = vmatprep.subr.mxu0 0.0
    %877 = vmatpush1.msra.mxu0 %v803
    %878 = vmatprep.subr.mxu0 0.0
    %879 = vmatpush1.msra.mxu0 %v804
    %880 = vmatprep.subr.mxu0 0.0
    %881 = vmatpush1.msra.mxu0 %v805
    %882 = vmatprep.subr.mxu0 0.0
    %883 = vmatpush1.msra.mxu0 %v806
    %884 = vmatprep.subr.mxu0 0.0
    %885 = vmatpush1.msra.mxu0 %v807
    %886 = vmatprep.subr.mxu0 0.0
    %887 = vmatpush1.msra.mxu0 %v808
    %888 = vmatprep.subr.mxu0 0.0
    %889 = vmatpush1.msra.mxu0 %v809
    %890 = vmatprep.mubr.f32.mxu0 %v761
    %891 = vmatmul.mubr.f32.gmra.mrb[0].mxu0 %v769
    %v892 = vpop.f32.mrb[0].mxu0
    %v893 = vadd.f32 0.0, %v892
    %v894 = vpop.f32.mrb[0].mxu0
    %895 = vmatprep.mubr.f32.mxu0 %v762
    %896 = vmatmul.mubr.f32.gmra.mrb[0].mxu0 %v770
    %v897 = vpop.f32.mrb[0].mxu0
    %v898 = vadd.f32 0.0, %v897
    %v899 = vpop.f32.mrb[0].mxu0
    %900 = vdwg.mxu0
    %901 = vmatprep.subr.mxu0 0.0
    %902 = vmatpush1.msra.mxu0 %v810
    %903 = vmatprep.subr.mxu0 0.0
    %904 = vmatpush1.msra.mxu0 %v811
    %905 = vmatprep.subr.mxu0 0.0
    %906 = vmatpush1.msra.mxu0 %v812
    %907 = vmatprep.subr.mxu0 0.0
    %908 = vmatpush1.msra.mxu0 %v813
    %909 = vmatprep.subr.mxu0 0.0
    %910 = vmatpush1.msra.mxu0 %v814
    %911 = vmatprep.subr.mxu0 0.0
    %912 = vmatpush1.msra.mxu0 %v815
    %913 = vmatprep.subr.mxu0 0.0
    %914 = vmatpush1.msra.mxu0 %v816
    %915 = vmatprep.subr.mxu0 0.0
    %916 = vmatpush1.msra.mxu0 %v817
    %917 = vmatprep.subr.mxu0 0.0
    %918 = vmatpush1.msra.mxu0 %v818
    %919 = vmatprep.subr.mxu0 0.0
    %920 = vmatpush1.msra.mxu0 %v819
    %921 = vmatprep.subr.mxu0 0.0
    %922 = vmatpush1.msra.mxu0 %v820
    %923 = vmatprep.subr.mxu0 0.0
    %924 = vmatpush1.msra.mxu0 %v821
    %925 = vmatprep.subr.mxu0 0.0
    %926 = vmatpush1.msra.mxu0 %v822
    %927 = vmatprep.subr.mxu0 0.0
    %928 = vmatpush1.msra.mxu0 %v823
    %929 = vmatprep.subr.mxu0 0.0
    %930 = vmatpush1.msra.mxu0 %v824
    %931 = vmatprep.subr.mxu0 0.0
    %932 = vmatpush1.msra.mxu0 %v825
    %933 = vmatprep.subr.mxu0 0.0
    %934 = vmatpush1.msra.mxu0 0.0
    %935 = vmatprep.subr.mxu0 0.0
    %936 = vmatpush1.msra.mxu0 0.0
    %937 = vmatprep.subr.mxu0 0.0
    %938 = vmatpush1.msra.mxu0 0.0
    %939 = vmatprep.subr.mxu0 0.0
    %940 = vmatpush1.msra.mxu0 0.0
    %941 = vmatprep.subr.mxu0 0.0
    %942 = vmatpush1.msra.mxu0 0.0
    %943 = vmatprep.subr.mxu0 0.0
    %944 = vmatpush1.msra.mxu0 0.0
    %945 = vmatprep.subr.mxu0 0.0
    %946 = vmatpush1.msra.mxu0 0.0
    %947 = vmatprep.subr.mxu0 0.0
    %948 = vmatpush1.msra.mxu0 0.0
    %949 = vmatprep.subr.mxu0 0.0
    %950 = vmatpush1.msra.mxu0 0.0
    %951 = vmatprep.subr.mxu0 0.0
    %952 = vmatpush1.msra.mxu0 0.0
    %953 = vmatprep.subr.mxu0 0.0
    %954 = vmatpush1.msra.mxu0 0.0
    %955 = vmatprep.subr.mxu0 0.0
    %956 = vmatpush1.msra.mxu0 0.0
    %957 = vmatprep.subr.mxu0 0.0
    %958 = vmatpush1.msra.mxu0 0.0
    %959 = vmatprep.subr.mxu0 0.0
    %960 = vmatpush1.msra.mxu0 0.0
    %961 = vmatprep.subr.mxu0 0.0
    %962 = vmatpush1.msra.mxu0 0.0
    %963 = vmatprep.subr.mxu0 0.0
    %964 = vmatpush1.msra.mxu0 0.0
    %965 = vmatprep.mubr.f32.mxu0 0.0
    %966 = vmatmul.mubr.f32.gmra.mrb[0].mxu0 %v775
    %v967 = vpop.f32.mrb[0].mxu0
    %v968 = vadd.f32 %v893, %v967
    %v969 = vpop.f32.mrb[0].mxu0
    %970 = vmatprep.mubr.f32.mxu0 0.0
    %971 = vmatmul.mubr.f32.gmra.mrb[0].mxu0 %v776
    %v972 = vpop.f32.mrb[0].mxu0
    %v973 = vadd.f32 %v898, %v972
    %v974 = vpop.f32.mrb[0].mxu0
    %975 = vdwg.mxu0
    %v976 = vmul.f32 %v968, %v318
    %v977 = vmul.f32 %v973, %v318
    %s978 = scalar_lea.vmem %s4, 16
    %v979 = vld [vmem:[%s978] sm:$0xff]
    %v980 = vadd.f32 %v976, %v979
    %v981 = vadd.f32 %v977, %v979
    %v982 = vmax.f32 %v980, 0.0
    %v983 = vmax.f32 %v981, 0.0
    %v986 = vrot.slane %v982, 7
    %v987 = vrot.slane %v983, 7
    %v990 = vsel %vm254, 0.0, %v986
    %v991 = vsel %vm254, 0.0, %v987
    %v992 = vrot.slane %v982, 1
    %v993 = vrot.slane %v983, 1
    %v996 = vsel %vm75, %v992, 0.0
    %v997 = vsel %vm75, %v993, 0.0
    %s998 = scalar_lea.vmem %s3, 1152
    %v999 = vld [vmem:[%s998] sm:$0xff]
    %v1000 = vld [vmem:[%s998 + $0x8] sm:$0xff]
    %v1001 = vld [vmem:[%s998 + $0x10] sm:$0xff]
    %v1002 = vld [vmem:[%s998 + $0x18] sm:$0xff]
    %v1003 = vld [vmem:[%s998 + $0x20] sm:$0xff]
    %v1004 = vld [vmem:[%s998 + $0x28] sm:$0xff]
    %v1005 = vld [vmem:[%s998 + $0x30] sm:$0xff]
    %v1006 = vld [vmem:[%s998 + $0x38] sm:$0xff]
    %v1007 = vld [vmem:[%s998 + $0x40] sm:$0xff]
    %v1008 = vld [vmem:[%s998 + $0x48] sm:$0xff]
    %v1009 = vld [vmem:[%s998 + $0x50] sm:$0xff]
    %v1010 = vld [vmem:[%s998 + $0x58] sm:$0xff]
    %v1011 = vld [vmem:[%s998 + $0x60] sm:$0xff]
    %v1012 = vld [vmem:[%s998 + $0x68] sm:$0xff]
    %v1013 = vld [vmem:[%s998 + $0x70] sm:$0xff]
    %v1014 = vld [vmem:[%s998 + $0x78] sm:$0xff]
    %v1015 = vld [vmem:[%s998 + $0x80] sm:$0xff]
    %v1016 = vld [vmem:[%s998 + $0x88] sm:$0xff]
    %v1017 = vld [vmem:[%s998 + $0x90] sm:$0xff]
    %v1018 = vld [vmem:[%s998 + $0x98] sm:$0xff]
    %v1019 = vld [vmem:[%s998 + $0xa0] sm:$0xff]
    %v1020 = vld [vmem:[%s998 + $0xa8] sm:$0xff]
    %v1021 = vld [vmem:[%s998 + $0xb0] sm:$0xff]
    %v1022 = vld [vmem:[%s998 + $0xb8] sm:$0xff]
    %v1023 = vld [vmem:[%s998 + $0xc0] sm:$0xff]
    %v1024 = vld [vmem:[%s998 + $0xc8] sm:$0xff]
    %v1025 = vld [vmem:[%s998 + $0xd0] sm:$0xff]
    %v1026 = vld [vmem:[%s998 + $0xd8] sm:$0xff]
    %v1027 = vld [vmem:[%s998 + $0xe0] sm:$0xff]
    %v1028 = vld [vmem:[%s998 + $0xe8] sm:$0xff]
    %v1029 = vld [vmem:[%s998 + $0xf0] sm:$0xff]
    %v1030 = vld [vmem:[%s998 + $0xf8] sm:$0xff]
    %v1031 = vld [vmem:[%s998 + $0x100] sm:$0xff]
    %v1032 = vld [vmem:[%s998 + $0x108] sm:$0xff]
    %v1033 = vld [vmem:[%s998 + $0x110] sm:$0xff]
    %v1034 = vld [vmem:[%s998 + $0x118] sm:$0xff]
    %v1035 = vld [vmem:[%s998 + $0x120] sm:$0xff]
    %v1036 = vld [vmem:[%s998 + $0x128] sm:$0xff]
    %v1037 = vld [vmem:[%s998 + $0x130] sm:$0xff]
    %v1038 = vld [vmem:[%s998 + $0x138] sm:$0xff]
    %v1039 = vld [vmem:[%s998 + $0x140] sm:$0xff]
    %v1040 = vld [vmem:[%s998 + $0x148] sm:$0xff]
    %v1041 = vld [vmem:[%s998 + $0x150] sm:$0xff]
    %v1042 = vld [vmem:[%s998 + $0x158] sm:$0xff]
    %v1043 = vld [vmem:[%s998 + $0x160] sm:$0xff]
    %v1044 = vld [vmem:[%s998 + $0x168] sm:$0xff]
    %v1045 = vld [vmem:[%s998 + $0x170] sm:$0xff]
    %v1046 = vld [vmem:[%s998 + $0x178] sm:$0xff]
    %1047 = vmatprep.subr.mxu0 0.0
    %1048 = vmatpush1.msra.mxu0 %v999
    %1049 = vmatprep.subr.mxu0 0.0
    %1050 = vmatpush1.msra.mxu0 %v1000
    %1051 = vmatprep.subr.mxu0 0.0
    %1052 = vmatpush1.msra.mxu0 %v1001
    %1053 = vmatprep.subr.mxu0 0.0
    %1054 = vmatpush1.msra.mxu0 %v1002
    %1055 = vmatprep.subr.mxu0 0.0
    %1056 = vmatpush1.msra.mxu0 %v1003
    %1057 = vmatprep.subr.mxu0 0.0
    %1058 = vmatpush1.msra.mxu0 %v1004
    %1059 = vmatprep.subr.mxu0 0.0
    %1060 = vmatpush1.msra.mxu0 %v1005
    %1061 = vmatprep.subr.mxu0 0.0
    %1062 = vmatpush1.msra.mxu0 %v1006
    %1063 = vmatprep.subr.mxu0 0.0
    %1064 = vmatpush1.msra.mxu0 %v1007
    %1065 = vmatprep.subr.mxu0 0.0
    %1066 = vmatpush1.msra.mxu0 %v1008
    %1067 = vmatprep.subr.mxu0 0.0
    %1068 = vmatpush1.msra.mxu0 %v1009
    %1069 = vmatprep.subr.mxu0 0.0
    %1070 = vmatpush1.msra.mxu0 %v1010
    %1071 = vmatprep.subr.mxu0 0.0
    %1072 = vmatpush1.msra.mxu0 %v1011
    %1073 = vmatprep.subr.mxu0 0.0
    %1074 = vmatpush1.msra.mxu0 %v1012
    %1075 = vmatprep.subr.mxu0 0.0
    %1076 = vmatpush1.msra.mxu0 %v1013
    %1077 = vmatprep.subr.mxu0 0.0
    %1078 = vmatpush1.msra.mxu0 %v1014
    %1079 = vmatprep.subr.mxu0 0.0
    %1080 = vmatpush1.msra.mxu0 %v1015
    %1081 = vmatprep.subr.mxu0 0.0
    %1082 = vmatpush1.msra.mxu0 %v1016
    %1083 = vmatprep.subr.mxu0 0.0
    %1084 = vmatpush1.msra.mxu0 %v1017
    %1085 = vmatprep.subr.mxu0 0.0
    %1086 = vmatpush1.msra.mxu0 %v1018
    %1087 = vmatprep.subr.mxu0 0.0
    %1088 = vmatpush1.msra.mxu0 %v1019
    %1089 = vmatprep.subr.mxu0 0.0
    %1090 = vmatpush1.msra.mxu0 %v1020
    %1091 = vmatprep.subr.mxu0 0.0
    %1092 = vmatpush1.msra.mxu0 %v1021
    %1093 = vmatprep.subr.mxu0 0.0
    %1094 = vmatpush1.msra.mxu0 %v1022
    %1095 = vmatprep.subr.mxu0 0.0
    %1096 = vmatpush1.msra.mxu0 %v1023
    %1097 = vmatprep.subr.mxu0 0.0
    %1098 = vmatpush1.msra.mxu0 %v1024
    %1099 = vmatprep.subr.mxu0 0.0
    %1100 = vmatpush1.msra.mxu0 %v1025
    %1101 = vmatprep.subr.mxu0 0.0
    %1102 = vmatpush1.msra.mxu0 %v1026
    %1103 = vmatprep.subr.mxu0 0.0
    %1104 = vmatpush1.msra.mxu0 %v1027
    %1105 = vmatprep.subr.mxu0 0.0
    %1106 = vmatpush1.msra.mxu0 %v1028
    %1107 = vmatprep.subr.mxu0 0.0
    %1108 = vmatpush1.msra.mxu0 %v1029
    %1109 = vmatprep.subr.mxu0 0.0
    %1110 = vmatpush1.msra.mxu0 %v1030
    %1111 = vmatprep.mubr.f32.mxu0 %v982
    %1112 = vmatmul.mubr.f32.gmra.mrb[0].mxu0 %v990
    %v1113 = vpop.f32.mrb[0].mxu0
    %v1114 = vadd.f32 0.0, %v1113
    %v1115 = vpop.f32.mrb[0].mxu0
    %1116 = vmatprep.mubr.f32.mxu0 %v983
    %1117 = vmatmul.mubr.f32.gmra.mrb[0].mxu0 %v991
    %v1118 = vpop.f32.mrb[0].mxu0
    %v1119 = vadd.f32 0.0, %v1118
    %v1120 = vpop.f32.mrb[0].mxu0
    %1121 = vdwg.mxu0
    %1122 = vmatprep.subr.mxu0 0.0
    %1123 = vmatpush1.msra.mxu0 %v1031
    %1124 = vmatprep.subr.mxu0 0.0
    %1125 = vmatpush1.msra.mxu0 %v1032
    %1126 = vmatprep.subr.mxu0 0.0
    %1127 = vmatpush1.msra.mxu0 %v1033
    %1128 = vmatprep.subr.mxu0 0.0
    %1129 = vmatpush1.msra.mxu0 %v1034
    %1130 = vmatprep.subr.mxu0 0.0
    %1131 = vmatpush1.msra.mxu0 %v1035
    %1132 = vmatprep.subr.mxu0 0.0
    %1133 = vmatpush1.msra.mxu0 %v1036
    %1134 = vmatprep.subr.mxu0 0.0
    %1135 = vmatpush1.msra.mxu0 %v1037
    %1136 = vmatprep.subr.mxu0 0.0
    %1137 = vmatpush1.msra.mxu0 %v1038
    %1138 = vmatprep.subr.mxu0 0.0
    %1139 = vmatpush1.msra.mxu0 %v1039
    %1140 = vmatprep.subr.mxu0 0.0
    %1141 = vmatpush1.msra.mxu0 %v1040
    %1142 = vmatprep.subr.mxu0 0.0
    %1143 = vmatpush1.msra.mxu0 %v1041
    %1144 = vmatprep.subr.mxu0 0.0
    %1145 = vmatpush1.msra.mxu0 %v1042
    %1146 = vmatprep.subr.mxu0 0.0
    %1147 = vmatpush1.msra.mxu0 %v1043
    %1148 = vmatprep.subr.mxu0 0.0
    %1149 = vmatpush1.msra.mxu0 %v1044
    %1150 = vmatprep.subr.mxu0 0.0
    %1151 = vmatpush1.msra.mxu0 %v1045
    %1152 = vmatprep.subr.mxu0 0.0
    %1153 = vmatpush1.msra.mxu0 %v1046
    %1154 = vmatprep.subr.mxu0 0.0
    %1155 = vmatpush1.msra.mxu0 0.0
    %1156 = vmatprep.subr.mxu0 0.0
    %1157 = vmatpush1.msra.mxu0 0.0
    %1158 = vmatprep.subr.mxu0 0.0
    %1159 = vmatpush1.msra.mxu0 0.0
    %1160 = vmatprep.subr.mxu0 0.0
    %1161 = vmatpush1.msra.mxu0 0.0
    %1162 = vmatprep.subr.mxu0 0.0
    %1163 = vmatpush1.msra.mxu0 0.0
    %1164 = vmatprep.subr.mxu0 0.0
    %1165 = vmatpush1.msra.mxu0 0.0
    %1166 = vmatprep.subr.mxu0 0.0
    %1167 = vmatpush1.msra.mxu0 0.0
    %1168 = vmatprep.subr.mxu0 0.0
    %1169 = vmatpush1.msra.mxu0 0.0
    %1170 = vmatprep.subr.mxu0 0.0
    %1171 = vmatpush1.msra.mxu0 0.0
    %1172 = vmatprep.subr.mxu0 0.0
    %1173 = vmatpush1.msra.mxu0 0.0
    %1174 = vmatprep.subr.mxu0 0.0
    %1175 = vmatpush1.msra.mxu0 0.0
    %1176 = vmatprep.subr.mxu0 0.0
    %1177 = vmatpush1.msra.mxu0 0.0
    %1178 = vmatprep.subr.mxu0 0.0
    %1179 = vmatpush1.msra.mxu0 0.0
    %1180 = vmatprep.subr.mxu0 0.0
    %1181 = vmatpush1.msra.mxu0 0.0
    %1182 = vmatprep.subr.mxu0 0.0
    %1183 = vmatpush1.msra.mxu0 0.0
    %1184 = vmatprep.subr.mxu0 0.0
    %1185 = vmatpush1.msra.mxu0 0.0
    %1186 = vmatprep.mubr.f32.mxu0 0.0
    %1187 = vmatmul.mubr.f32.gmra.mrb[0].mxu0 %v996
    %v1188 = vpop.f32.mrb[0].mxu0
    %v1189 = vadd.f32 %v1114, %v1188
    %v1190 = vpop.f32.mrb[0].mxu0
    %1191 = vmatprep.mubr.f32.mxu0 0.0
    %1192 = vmatmul.mubr.f32.gmra.mrb[0].mxu0 %v997
    %v1193 = vpop.f32.mrb[0].mxu0
    %v1194 = vadd.f32 %v1119, %v1193
    %v1195 = vpop.f32.mrb[0].mxu0
    %1196 = vdwg.mxu0
    %v1197 = vmul.f32 %v1189, %v318
    %v1198 = vmul.f32 %v1194, %v318
    %s1199 = scalar_lea.vmem %s4, 24
    %v1200 = vld [vmem:[%s1199] sm:$0xff]
    %v1201 = vadd.f32 %v1197, %v1200
    %v1202 = vadd.f32 %v1198, %v1200
    %v1203 = vadd.f32 %v759, %v1201
    %v1204 = vadd.f32 %v760, %v1202
    %1205 = vst [vmem:[%s5] sm:$0xff] %v1203
    %1206 = vst [vmem:[%s5 + $0x8] sm:$0xff] %v1204
    // Predicated region
    $region26: #{impala_block_forward.1} parent=1 // pred_check
      _
    $region27: #{impala_block_forward.1} parent=1 // pred_check_branch
      %1208 = sbr.rel (0) target = $region29
    $region28: #{impala_block_forward.1} parent=1 // pred_region
      _
    $region29: #{impala_block_forward.1} parent=1 // pred_fallthru
      _
    // Predicated region
    $region30: #{impala_block_forward.1} parent=1 // pred_check
      _
    $region31: #{impala_block_forward.1} parent=1 // pred_check_branch
      %1210 = sbr.rel (0) target = $region33
    $region32: #{impala_block_forward.1} parent=1 // pred_region
      _
    $region33: #{impala_block_forward.1} parent=1 // pred_fallthru
      _
    %1211 = vsyncpa [#allocation3], 1

</llo_original>
